<compile_context>
chip_gen: v5e
topology: v5e:2x2
jax: 0.10.0
libtpu: 0.0.40
codegen_flags: <defaults>
</compile_context>

<pallas_src>
import jax
import jax.numpy as jnp
from jax.experimental import pallas as pl
from jax.experimental.pallas import tpu as pltpu

NUM_CLASSES = 20
# colors(3) + density(1) + semantic(NUM_CLASSES+1 = 21) + sem_out(1) = 26
OUT_CH = 4 + (NUM_CLASSES + 1) + 1


# ---------------------------------------------------------------------------
# Fused kernel: masked mean over rfn + dir_diff fold + single-matmul head.
# All tensors are channel-first with M = tr*dn in the lane axis.
# ---------------------------------------------------------------------------
def _fused_agg_kernel(feat_ref, q_ref, wt_ref, b_ref, out_ref):
    """
    feat_ref : (rfn, C, M)   channels = [ray_feats(F)|hit|vis|alpha|rgb(3)|dir(3)|mask]
    q_ref    : (3, M)        que_dir replicated across the dn samples of each ray
    wt_ref   : (OUT, F+10)   W^T, columns = [F|hit|vis|alpha|rgb(3)|diff(3)|dot]
    b_ref    : (OUT, 1)
    out_ref  : (OUT, M)
    """
    rfn, ct, _ = feat_ref.shape
    f32 = jnp.float32
    n_feat = ct - 1          # mask is the last slab channel
    n_dir0 = n_feat - 3      # dir channels live at [n_dir0, n_feat)

    # Masked sums over the (tiny) reference-view axis, unrolled; everything is
    # lane-dense so each multiply is a full-width VPU op.
    fr = feat_ref[0].astype(f32)                    # (C, M)
    msk = fr[n_feat:ct, :]                          # (1, M)
    s = fr * msk
    msum = msk
    for r in range(1, rfn):
        fr = feat_ref[r].astype(f32)
        msk = fr[n_feat:ct, :]
        s = s + fr * msk
        msum = msum + msk

    inv = 1.0 / (msum + 1e-8)                       # exact divide (keeps 1e-4 tol)
    ratio = msum * inv                              # ~1 where any view is valid

    pooled = s[0:n_dir0, :] * inv                   # (F+6, M): rf|hit|vis|alpha|rgb
    p_dir = s[n_dir0:n_feat, :] * inv               # (3, M)

    # dir_diff / dir_dot folded through the linear masked mean.
    q = q_ref[...].astype(f32)                      # (3, M), constant per ray-lane-block
    p_diff = p_dir - q * ratio                      # pooled(prj_dir - que_dir)
    p_dot = jnp.sum(p_dir * q, axis=0, keepdims=True)   # pooled(<prj_dir, que_dir>)

    # Single MXU matmul over the full pooled slab; lanes = M, unmasked store.
    full = jnp.concatenate([pooled, p_diff, p_dot], axis=0)        # (F+10, M)
    acc = jnp.dot(wt_ref[...], full, preferred_element_type=f32)   # (OUT, M)
    out_ref[...] = (acc + b_ref[...]).astype(out_ref.dtype)


# ---------------------------------------------------------------------------
# Wrapper: layout plumbing + generation-aware grid sizing.
# ---------------------------------------------------------------------------
def _num_tensorcores():
    try:
        kind = jax.devices()[0].device_kind.lower()
    except Exception:
        return 1
    # v7x has 2 TensorCores per chip; v5e/v6e have 1.
    return 2 if ("v7" in kind or "7x" in kind) else 1


def _pick_block_rays(rn, dn, bytes_per_ray, num_tc, budget=8 << 20):
    """Largest rays-per-step such that grid >= num_tc, lanes stay 128-aligned,
    and the double-buffered block stays well inside the scoped VMEM budget."""
    target = max(1, rn // max(1, num_tc))
    cands = sorted(t for t in range(1, rn + 1)
                   if rn % t == 0 and (t == rn or (t * dn) % 128 == 0))
    ok = [t for t in cands if t <= target and t * bytes_per_ray <= budget]
    return ok[-1] if ok else cands[0]


def fused_agg_forward(ray_feats, hit_prob, vis, alpha, rgb, prj_dir, mask,
                      que_dir, w, b, *, stream_dtype=jnp.float32):
    """Fused get_dir_diff + masked-mean over rfn + linear head.

    Returns channel-first (out_ch, rn, dn) float32.
    """
    rn, rfn, dn, F = ray_feats.shape
    out_ch = w.shape[1]
    ct = F + 10                         # 41 feature channels + 1 mask channel
    assert w.shape[0] == F + 10, "weight rows must be [F|hit|vis|alpha|rgb|diff3|dot]"

    # Channel-first, lane-dense feature slab: (rfn, C, rn*dn). Wrapper-side
    # concat/transpose is layout plumbing only (~1 MiB at demo size).
    feat = jnp.concatenate(
        [ray_feats, hit_prob, vis, alpha, rgb, prj_dir,
         mask.astype(ray_feats.dtype)], axis=-1)                   # (rn, rfn, dn, C)
    feat = jnp.transpose(feat, (1, 3, 0, 2)).reshape(rfn, ct, rn * dn)
    feat = feat.astype(stream_dtype)    # bf16 here halves HBM traffic if desired

    # que_dir replicated across depth samples so it lines up with the lane axis.
    q_lanes = jnp.broadcast_to(que_dir[:, None, :], (rn, dn, 3))
    q_lanes = jnp.transpose(q_lanes, (2, 0, 1)).reshape(3, rn * dn)
    q_lanes = q_lanes.astype(jnp.float32)

    wt = jnp.asarray(w, jnp.float32).T                  # (out_ch, F+10)
    b_col = jnp.asarray(b, jnp.float32).reshape(out_ch, 1)

    num_tc = _num_tensorcores()
    itemsize = jnp.dtype(stream_dtype).itemsize
    bytes_per_ray = rfn * ct * dn * itemsize * 2        # double-buffered
    tr = _pick_block_rays(rn, dn, bytes_per_ray, num_tc)
    m_blk = tr * dn
    grid = (rn // tr,)

    cost = pl.CostEstimate(
        flops=2 * rn * dn * (F + 10) * out_ch + 4 * rn * rfn * dn * ct,
        transcendentals=0,
        bytes_accessed=(feat.size * itemsize + q_lanes.size * 4
                        + wt.size * 4 + b_col.size * 4 + rn * dn * out_ch * 4))

    out = pl.pallas_call(
        _fused_agg_kernel,
        out_shape=jax.ShapeDtypeStruct((out_ch, rn * dn), jnp.float32),
        grid=grid,
        in_specs=[
            pl.BlockSpec((rfn, ct, m_blk), lambda i: (0, 0, i)),   # feature slab
            pl.BlockSpec((3, m_blk), lambda i: (0, i)),            # que_dir lanes
            pl.BlockSpec(wt.shape, lambda i: (0, 0)),              # W^T (26, 42)
            pl.BlockSpec(b_col.shape, lambda i: (0, 0)),           # bias (26, 1)
        ],
        out_specs=pl.BlockSpec((out_ch, m_blk), lambda i: (0, i)),
        compiler_params=pltpu.CompilerParams(
            dimension_semantics=("parallel",)),
        cost_estimate=cost,
    )(feat, q_lanes, wt, b_col)

    return out.reshape(out_ch, rn, dn)


# ---------------------------------------------------------------------------
# Module wrapper (glue in plain JAX)
# ---------------------------------------------------------------------------
class SemanticAggregationNetV2:
    """JAX/Pallas port of SemanticAggregationNet_v2's forward pass.

    # TODO(synk): the reference agg_impl comes from name2network[...] which is
    # not provided; a deterministic masked-mean + linear head with the same
    # output channel layout (3 + 1 + 21 + 1 = 26) is used in its place.
    """

    def __init__(self, key, feat_dim=32):
        self.feat_dim = feat_dim
        # ray_feats(f) + hit_prob(1) + vis(1) + alpha(1) + rgb(3) + dir_diff(4)
        in_feats = feat_dim + 1 + 1 + 1 + 3 + 4
        k1, k2 = jax.random.split(key)
        self.w = jax.random.normal(k1, (in_feats, OUT_CH), jnp.float32) * 0.05
        self.b = jax.random.normal(k2, (1, OUT_CH), jnp.float32) * 0.01

    def __call__(self, prj_dict, que_dir):
        out_cf = fused_agg_forward(
            prj_dict['ray_feats'], prj_dict['hit_prob'], prj_dict['vis'],
            prj_dict['alpha'], prj_dict['rgb'], prj_dict['dir'],
            prj_dict['mask'], que_dir, self.w, self.b)      # (26, rn, dn)
        outs = jnp.moveaxis(out_cf, 0, -1)                  # (rn, dn, 26) plumbing
        return {'colors': outs[..., :3],
                'density': outs[..., 3:4],
                'semantic': outs[..., 4:4 + 21],
                'sem_out': outs[..., 4 + 21:4 + 22]}


if __name__ == "__main__":
    rn, rfn, dn, f = 32, 3, 64, 32

    key = jax.random.PRNGKey(0)
    keys = jax.random.split(key, 8)

    prj_dict = {
        'ray_feats': jax.random.normal(keys[0], (rn, rfn, dn, f), jnp.float32),
        'hit_prob':  jax.nn.sigmoid(jax.random.normal(keys[1], (rn, rfn, dn, 1), jnp.float32)),
        'vis':       jax.nn.sigmoid(jax.random.normal(keys[2], (rn, rfn, dn, 1), jnp.float32)),
        'alpha':     jax.nn.sigmoid(jax.random.normal(keys[3], (rn, rfn, dn, 1), jnp.float32)),
        'rgb':       jax.nn.sigmoid(jax.random.normal(keys[4], (rn, rfn, dn, 3), jnp.float32)),
        'dir':       jax.random.normal(keys[5], (rn, rfn, dn, 3), jnp.float32),
        'mask':      (jax.random.uniform(keys[6], (rn, rfn, dn, 1)) > 0.2),
    }
    que_dir = jax.random.normal(keys[7], (rn, 3), jnp.float32)

    net = SemanticAggregationNetV2(jax.random.PRNGKey(42), feat_dim=f)
    out = net(prj_dict, que_dir)
    jax.block_until_ready(out)

    # Sanity check against a plain-JAX reference of the same forward semantics
    # (get_dir_diff -> concat -> masked mean over rfn -> linear head).
    qd = que_dir[:, None, None, :]
    dir_diff = jnp.concatenate(
        [prj_dict['dir'] - qd,
         jnp.sum(prj_dict['dir'] * qd, axis=-1, keepdims=True)], axis=-1)
    feats = jnp.concatenate(
        [prj_dict['ray_feats'], prj_dict['hit_prob'], prj_dict['vis'],
         prj_dict['alpha'], prj_dict['rgb'], dir_diff], axis=-1)
    m = prj_dict['mask'].astype(jnp.float32)
    pooled = jnp.sum(feats * m, axis=1) / (jnp.sum(m, axis=1) + 1e-8)
    ref = pooled @ net.w + net.b                                   # (rn, dn, 26)

    got = jnp.concatenate([out['colors'], out['density'],
                           out['semantic'], out['sem_out']], axis=-1)
    assert got.shape == (rn, dn, OUT_CH)
    assert jnp.allclose(got, ref, atol=1e-4, rtol=1e-4), "fused aggregation mismatch"

    assert out['colors'].shape == (rn, dn, 3)
    assert out['density'].shape == (rn, dn, 1)
    assert out['semantic'].shape == (rn, dn, 21)
    assert out['sem_out'].shape == (rn, dn, 1)

    print("KERNEL_OK")
</pallas_src>

<mosaic_0001>
module attributes {stable_mosaic.version = 11 : i64} {
  func.func @_fused_agg_kernel(%arg0: i32, %arg1: memref<3x42x2048xf32, #tpu.memory_space<vmem>>, %arg2: memref<3x2048xf32, #tpu.memory_space<vmem>>, %arg3: memref<26x42xf32, #tpu.memory_space<vmem>>, %arg4: memref<26x1xf32, #tpu.memory_space<vmem>>, %arg5: memref<26x2048xf32, #tpu.memory_space<vmem>>) attributes {dimension_semantics = [#tpu.dimension_semantics<parallel>], iteration_bounds = array<i64: 1>, scalar_prefetch = 0 : i64, scratch_operands = 0 : i64, tpu.core_type = #tpu.core_type<tc>, window_params = [{transform_indices = @transform_0, window_bounds = array<i64: 3, 42, 2048>}, {transform_indices = @transform_1, window_bounds = array<i64: 3, 2048>}, {pipeline_mode = #tpu.pipeline_mode<synchronous>, transform_indices = @transform_2, window_bounds = array<i64: 26, 42>}, {pipeline_mode = #tpu.pipeline_mode<synchronous>, transform_indices = @transform_3, window_bounds = array<i64: 26, 1>}, {transform_indices = @transform_4, window_bounds = array<i64: 26, 2048>}]} {
    %c0 = arith.constant 0 : index
    %c0_0 = arith.constant 0 : index
    %c0_1 = arith.constant 0 : index
    %0 = vector.load %arg1[%c0, %c0_0, %c0_1] : memref<3x42x2048xf32, #tpu.memory_space<vmem>>, vector<1x42x2048xf32>
    %1 = vector.shape_cast %0 : vector<1x42x2048xf32> to vector<42x2048xf32>
    %2 = vector.extract_strided_slice %1 {offsets = [41, 0], sizes = [1, 2048], strides = [1, 1]} : vector<42x2048xf32> to vector<1x2048xf32>
    %3 = vector.broadcast %2 : vector<1x2048xf32> to vector<42x2048xf32>
    %4 = arith.mulf %1, %3 : vector<42x2048xf32>
    %c1 = arith.constant 1 : index
    %c0_2 = arith.constant 0 : index
    %c0_3 = arith.constant 0 : index
    %5 = vector.load %arg1[%c1, %c0_2, %c0_3] : memref<3x42x2048xf32, #tpu.memory_space<vmem>>, vector<1x42x2048xf32>
    %6 = vector.shape_cast %5 : vector<1x42x2048xf32> to vector<42x2048xf32>
    %7 = vector.extract_strided_slice %6 {offsets = [41, 0], sizes = [1, 2048], strides = [1, 1]} : vector<42x2048xf32> to vector<1x2048xf32>
    %8 = vector.broadcast %7 : vector<1x2048xf32> to vector<42x2048xf32>
    %9 = arith.mulf %6, %8 : vector<42x2048xf32>
    %10 = arith.addf %4, %9 : vector<42x2048xf32>
    %11 = arith.addf %2, %7 : vector<1x2048xf32>
    %c2 = arith.constant 2 : index
    %c0_4 = arith.constant 0 : index
    %c0_5 = arith.constant 0 : index
    %12 = vector.load %arg1[%c2, %c0_4, %c0_5] : memref<3x42x2048xf32, #tpu.memory_space<vmem>>, vector<1x42x2048xf32>
    %13 = vector.shape_cast %12 : vector<1x42x2048xf32> to vector<42x2048xf32>
    %14 = vector.extract_strided_slice %13 {offsets = [41, 0], sizes = [1, 2048], strides = [1, 1]} : vector<42x2048xf32> to vector<1x2048xf32>
    %15 = vector.broadcast %14 : vector<1x2048xf32> to vector<42x2048xf32>
    %16 = arith.mulf %13, %15 : vector<42x2048xf32>
    %17 = arith.addf %10, %16 : vector<42x2048xf32>
    %18 = arith.addf %11, %14 : vector<1x2048xf32>
    %cst = arith.constant 9.99999993E-9 : f32
    %19 = vector.broadcast %cst : f32 to vector<1x2048xf32>
    %20 = arith.addf %18, %19 : vector<1x2048xf32>
    %cst_6 = arith.constant 1.000000e+00 : f32
    %21 = vector.broadcast %cst_6 : f32 to vector<1x2048xf32>
    %22 = arith.divf %21, %20 : vector<1x2048xf32>
    %23 = arith.mulf %18, %22 : vector<1x2048xf32>
    %24 = vector.extract_strided_slice %17 {offsets = [0, 0], sizes = [38, 2048], strides = [1, 1]} : vector<42x2048xf32> to vector<38x2048xf32>
    %25 = vector.broadcast %22 : vector<1x2048xf32> to vector<38x2048xf32>
    %26 = arith.mulf %24, %25 : vector<38x2048xf32>
    %27 = vector.extract_strided_slice %17 {offsets = [38, 0], sizes = [3, 2048], strides = [1, 1]} : vector<42x2048xf32> to vector<3x2048xf32>
    %28 = vector.broadcast %22 : vector<1x2048xf32> to vector<3x2048xf32>
    %29 = arith.mulf %27, %28 : vector<3x2048xf32>
    %c0_7 = arith.constant 0 : index
    %c0_8 = arith.constant 0 : index
    %30 = vector.load %arg2[%c0_7, %c0_8] : memref<3x2048xf32, #tpu.memory_space<vmem>>, vector<3x2048xf32>
    %31 = vector.broadcast %23 : vector<1x2048xf32> to vector<3x2048xf32>
    %32 = arith.mulf %30, %31 : vector<3x2048xf32>
    %33 = arith.subf %29, %32 : vector<3x2048xf32>
    %34 = arith.mulf %29, %30 : vector<3x2048xf32>
    %cst_9 = arith.constant dense<0.000000e+00> : vector<2048xf32>
    %35 = vector.multi_reduction <add>, %34, %cst_9 [0] : vector<3x2048xf32> to vector<2048xf32>
    %36 = vector.shape_cast %35 : vector<2048xf32> to vector<1x2048xf32>
    %37 = tpu.concatenate %26, %33, %36 in 0 : vector<38x2048xf32>, vector<3x2048xf32>, vector<1x2048xf32> -> vector<42x2048xf32>
    %c0_10 = arith.constant 0 : index
    %c0_11 = arith.constant 0 : index
    %38 = vector.load %arg3[%c0_10, %c0_11] : memref<26x42xf32, #tpu.memory_space<vmem>>, vector<26x42xf32>
    %cst_12 = arith.constant dense<0.000000e+00> : vector<26x2048xf32>
    %39 = tpu.matmul %38, %37, %cst_12 {dimension_numbers = #tpu.dot_dimension_numbers<[1], [0], [0], [1], [0, 0, 1, 1], [], []>} : vector<26x42xf32>, vector<42x2048xf32>, vector<26x2048xf32> -> vector<26x2048xf32>
    %c0_13 = arith.constant 0 : index
    %c0_14 = arith.constant 0 : index
    %40 = vector.load %arg4[%c0_13, %c0_14] : memref<26x1xf32, #tpu.memory_space<vmem>>, vector<26x1xf32>
    %41 = vector.broadcast %40 : vector<26x1xf32> to vector<26x2048xf32>
    %42 = arith.addf %39, %41 : vector<26x2048xf32>
    %c0_15 = arith.constant 0 : index
    %c0_16 = arith.constant 0 : index
    %43 = vector.load %arg5[%c0_15, %c0_16] : memref<26x2048xf32, #tpu.memory_space<vmem>>, vector<26x2048xf32>
    tpu.vector_store %arg5[%c0_15, %c0_16], %42 {strides = array<i32>} : memref<26x2048xf32, #tpu.memory_space<vmem>>, vector<26x2048xf32>,
    return
  }
  func.func @transform_0(%arg0: i32) -> (i32, i32, i32) {
    %c0_i32 = arith.constant 0 : i32
    %c0_i32_0 = arith.constant 0 : i32
    %c0_i32_1 = arith.constant 0 : i32
    return %c0_i32, %c0_i32_0, %arg0 : i32, i32, i32
  }
  func.func @transform_1(%arg0: i32) -> (i32, i32) {
    %c0_i32 = arith.constant 0 : i32
    %c0_i32_0 = arith.constant 0 : i32
    return %c0_i32, %arg0 : i32, i32
  }
  func.func @transform_2(%arg0: i32) -> (i32, i32) {
    %c0_i32 = arith.constant 0 : i32
    %c0_i32_0 = arith.constant 0 : i32
    %c0_i32_1 = arith.constant 0 : i32
    return %c0_i32, %c0_i32_0 : i32, i32
  }
  func.func @transform_3(%arg0: i32) -> (i32, i32) {
    %c0_i32 = arith.constant 0 : i32
    %c0_i32_0 = arith.constant 0 : i32
    %c0_i32_1 = arith.constant 0 : i32
    return %c0_i32, %c0_i32_0 : i32, i32
  }
  func.func @transform_4(%arg0: i32) -> (i32, i32) {
    %c0_i32 = arith.constant 0 : i32
    %c0_i32_0 = arith.constant 0 : i32
    return %c0_i32, %arg0 : i32, i32
  }
}

</mosaic_0001>

<llo_original>
// kernel: tpu_custom_call.1
$region0: #{tpu_custom_call.1}
  #allocation0 [shape = 'u32[]', space=smem, size = 0x4, offset = 0x4, fixed_abs, tag = 'smem constant byte address 0x4 - core index']
  #allocation1 [shape = 'u32[72,128]{1,0:T(1,128)}', space=vmem, size = 0x9000, scoped, tag = 'internal scratch']
  %s0 = inlined_call_operand.hbm [shape: f32[3,42,2048], index: 0, kind: input, shape index: {}]
  %s1 = inlined_call_operand.hbm [shape: f32[3,2048], index: 1, kind: input, shape index: {}]
  %s2 = inlined_call_operand.hbm [shape: f32[26,42], index: 2, kind: input, shape index: {}]
  %s3 = inlined_call_operand.vmem [shape: f32[26,1], index: 3, kind: input, shape index: {}]
  %s4 = inlined_call_operand.hbm [shape: f32[26,2048], index: 4, kind: output, shape index: {}]
  %s5 = sld [smem:[#allocation0]]
  $region38: #{tpu_custom_call.1} parent=0
    _
  %s7 = ssub.s32 1, %s5
  %s8 = scalar_select 0, %s7, %s5
  $region1: #{tpu_custom_call.1} parent=0
    #allocation2 [shape = 'u8[1179648]{0}', space=vmem, size = 0x120000, scoped, tag = 'input window, operand 0, single buffered']
    #allocation3 [shape = 's32[1]{0}', space=sflag, size = 0x4, scoped, tag = 'scoped memory for tpu_custom_call.1']
    #allocation4 [shape = 's32[1]{0}', space=sflag, size = 0x4, scoped, tag = 'scoped memory for tpu_custom_call.1']
    #allocation5 [shape = 'u8[32768]{0}', space=vmem, size = 0x8000, scoped, tag = 'input window, operand 1, single buffered']
    #allocation6 [shape = 's32[1]{0}', space=sflag, size = 0x4, scoped, tag = 'scoped memory for tpu_custom_call.1']
    #allocation7 [shape = 'u8[16384]{0}', space=vmem, size = 0x4000, scoped, tag = 'input window, operand 2, single buffered']
    #allocation8 [shape = 'u8[262144]{0}', space=vmem, size = 0x40000, scoped, tag = 'output window, operand 0, single buffered']
    %9 = vsyncpa [#allocation3], 0
    %10 = vsyncpa [#allocation6], 0
    %11 = vsyncpa [#allocation4], 0
    // Predicated region
    $region2: #{tpu_custom_call.1} parent=1 // pred_check
      _
    $region3: #{tpu_custom_call.1} parent=1 // pred_check_branch
      %13 = sbr.rel (0) target = $region5
    $region4: #{tpu_custom_call.1} parent=1 // pred_region
      %15 = vsyncadd [#allocation3], 0
      %s16 = sshll.u32 %s0, 4
      %s17 = int_to_ptr.hbm [resolvable:$true] %s16
      %s18 = sshll.u32 [#allocation2], 4
      %s19 = int_to_ptr.vmem [resolvable:$true] %s18
      %24 = dma.hbm_to_vmem [thread:$0]  %s17, 36864, %s19, [#allocation3], 2048, 2048, 128
    $region5: #{tpu_custom_call.1} parent=1 // pred_fallthru
      _
    // Predicated region
    $region6: #{tpu_custom_call.1} parent=1 // pred_check
      _
    $region7: #{tpu_custom_call.1} parent=1 // pred_check_branch
      %26 = sbr.rel (0) target = $region9
    $region8: #{tpu_custom_call.1} parent=1 // pred_region
      %28 = vsyncadd [#allocation6], 0
      %s30 = sshll.u32 %s1, 4
      %s31 = int_to_ptr.hbm [resolvable:$true] %s30
      %s32 = sshll.u32 [#allocation5], 4
      %s33 = int_to_ptr.vmem [resolvable:$true] %s32
      %35 = dma.hbm_to_vmem [thread:$0]  %s31, 1024, %s33, [#allocation6]
    $region9: #{tpu_custom_call.1} parent=1 // pred_fallthru
      _
    // Predicated region
    $region10: #{tpu_custom_call.1} parent=1 // pred_check
      _
    $region11: #{tpu_custom_call.1} parent=1 // pred_check_branch
      %37 = sbr.rel (0) target = $region13
    $region12: #{tpu_custom_call.1} parent=1 // pred_region
      %39 = vsyncadd [#allocation6], 0
      %s40 = sshll.u32 %s2, 4
      %s41 = int_to_ptr.hbm [resolvable:$true] %s40
      %s42 = sshll.u32 [#allocation7], 4
      %s43 = int_to_ptr.vmem [resolvable:$true] %s42
      %48 = dma.hbm_to_vmem [thread:$0]  %s41, 512, %s43, [#allocation6], 128, 128, 8
    $region13: #{tpu_custom_call.1} parent=1 // pred_fallthru
      _
    // Predicated region
    $region14: #{tpu_custom_call.1} parent=1 // pred_check
      _
    $region15: #{tpu_custom_call.1} parent=1 // pred_check_branch
      %50 = sbr.rel (0) target = $region17
    $region16: #{tpu_custom_call.1} parent=1 // pred_region
      _
    $region17: #{tpu_custom_call.1} parent=1 // pred_fallthru
      _
    // Predicated region
    $region18: #{tpu_custom_call.1} parent=1 // pred_check
      _
    $region19: #{tpu_custom_call.1} parent=1 // pred_check_branch
      %52 = sbr.rel (0) target = $region21
    $region20: #{tpu_custom_call.1} parent=1 // pred_region
      %54 = dma.done [#allocation3], 36864
    $region21: #{tpu_custom_call.1} parent=1 // pred_fallthru
      _
    // Predicated region
    $region22: #{tpu_custom_call.1} parent=1 // pred_check
      _
    $region23: #{tpu_custom_call.1} parent=1 // pred_check_branch
      %56 = sbr.rel (0) target = $region25
    $region24: #{tpu_custom_call.1} parent=1 // pred_region
      %58 = dma.done [#allocation6], 1024
    $region25: #{tpu_custom_call.1} parent=1 // pred_fallthru
      _
    // Predicated region
    $region26: #{tpu_custom_call.1} parent=1 // pred_check
      _
    $region27: #{tpu_custom_call.1} parent=1 // pred_check_branch
      %60 = sbr.rel (0) target = $region29
    $region28: #{tpu_custom_call.1} parent=1 // pred_region
      %62 = dma.done [#allocation6], 512
    $region29: #{tpu_custom_call.1} parent=1 // pred_fallthru
      _
    %v63 = vld [vmem:[#allocation2] sm:$0xff]
    %v64 = vld [vmem:[#allocation2 + $0x8] sm:$0xff]
    %v65 = vld [vmem:[#allocation2 + $0x10] sm:$0xff]
    %v66 = vld [vmem:[#allocation2 + $0x18] sm:$0xff]
    %v67 = vld [vmem:[#allocation2 + $0x20] sm:$0xff]
    %v68 = vld [vmem:[#allocation2 + $0x28] sm:$0xff]
    %v69 = vld [vmem:[#allocation2 + $0x30] sm:$0xff]
    %v70 = vld [vmem:[#allocation2 + $0x38] sm:$0xff]
    %v71 = vld [vmem:[#allocation2 + $0x40] sm:$0xff]
    %v72 = vld [vmem:[#allocation2 + $0x48] sm:$0xff]
    %v73 = vld [vmem:[#allocation2 + $0x50] sm:$0xff]
    %v74 = vld [vmem:[#allocation2 + $0x58] sm:$0xff]
    %v75 = vld [vmem:[#allocation2 + $0x60] sm:$0xff]
    %v76 = vld [vmem:[#allocation2 + $0x68] sm:$0xff]
    %v77 = vld [vmem:[#allocation2 + $0x70] sm:$0xff]
    %v78 = vld [vmem:[#allocation2 + $0x78] sm:$0xff]
    %v79 = vld [vmem:[#allocation2 + $0x80] sm:$0xff]
    %v80 = vld [vmem:[#allocation2 + $0x88] sm:$0xff]
    %v81 = vld [vmem:[#allocation2 + $0x90] sm:$0xff]
    %v82 = vld [vmem:[#allocation2 + $0x98] sm:$0xff]
    %v83 = vld [vmem:[#allocation2 + $0xa0] sm:$0xff]
    %v84 = vld [vmem:[#allocation2 + $0xa8] sm:$0xff]
    %v85 = vld [vmem:[#allocation2 + $0xb0] sm:$0xff]
    %v86 = vld [vmem:[#allocation2 + $0xb8] sm:$0xff]
    %v87 = vld [vmem:[#allocation2 + $0xc0] sm:$0xff]
    %v88 = vld [vmem:[#allocation2 + $0xc8] sm:$0xff]
    %v89 = vld [vmem:[#allocation2 + $0xd0] sm:$0xff]
    %v90 = vld [vmem:[#allocation2 + $0xd8] sm:$0xff]
    %v91 = vld [vmem:[#allocation2 + $0xe0] sm:$0xff]
    %v92 = vld [vmem:[#allocation2 + $0xe8] sm:$0xff]
    %v93 = vld [vmem:[#allocation2 + $0xf0] sm:$0xff]
    %v94 = vld [vmem:[#allocation2 + $0xf8] sm:$0xff]
    %v95 = vld [vmem:[#allocation2 + $0x100] sm:$0xff]
    %v96 = vld [vmem:[#allocation2 + $0x108] sm:$0xff]
    %v97 = vld [vmem:[#allocation2 + $0x110] sm:$0xff]
    %v98 = vld [vmem:[#allocation2 + $0x118] sm:$0xff]
    %v99 = vld [vmem:[#allocation2 + $0x120] sm:$0xff]
    %v100 = vld [vmem:[#allocation2 + $0x128] sm:$0xff]
    %v101 = vld [vmem:[#allocation2 + $0x130] sm:$0xff]
    %v102 = vld [vmem:[#allocation2 + $0x138] sm:$0xff]
    %v103 = vld [vmem:[#allocation2 + $0x140] sm:$0xff]
    %v104 = vld [vmem:[#allocation2 + $0x148] sm:$0xff]
    %v105 = vld [vmem:[#allocation2 + $0x150] sm:$0xff]
    %v106 = vld [vmem:[#allocation2 + $0x158] sm:$0xff]
    %v107 = vld [vmem:[#allocation2 + $0x160] sm:$0xff]
    %v108 = vld [vmem:[#allocation2 + $0x168] sm:$0xff]
    %v109 = vld [vmem:[#allocation2 + $0x170] sm:$0xff]
    %v110 = vld [vmem:[#allocation2 + $0x178] sm:$0xff]
    %v111 = vld [vmem:[#allocation2 + $0x180] sm:$0xff]
    %v112 = vld [vmem:[#allocation2 + $0x188] sm:$0xff]
    %v113 = vld [vmem:[#allocation2 + $0x190] sm:$0xff]
    %v114 = vld [vmem:[#allocation2 + $0x198] sm:$0xff]
    %v115 = vld [vmem:[#allocation2 + $0x1a0] sm:$0xff]
    %v116 = vld [vmem:[#allocation2 + $0x1a8] sm:$0xff]
    %v117 = vld [vmem:[#allocation2 + $0x1b0] sm:$0xff]
    %v118 = vld [vmem:[#allocation2 + $0x1b8] sm:$0xff]
    %v119 = vld [vmem:[#allocation2 + $0x1c0] sm:$0xff]
    %v120 = vld [vmem:[#allocation2 + $0x1c8] sm:$0xff]
    %v121 = vld [vmem:[#allocation2 + $0x1d0] sm:$0xff]
    %v122 = vld [vmem:[#allocation2 + $0x1d8] sm:$0xff]
    %v123 = vld [vmem:[#allocation2 + $0x1e0] sm:$0xff]
    %v124 = vld [vmem:[#allocation2 + $0x1e8] sm:$0xff]
    %v125 = vld [vmem:[#allocation2 + $0x1f0] sm:$0xff]
    %v126 = vld [vmem:[#allocation2 + $0x1f8] sm:$0xff]
    %v127 = vld [vmem:[#allocation2 + $0x200] sm:$0xff]
    %v128 = vld [vmem:[#allocation2 + $0x208] sm:$0xff]
    %v129 = vld [vmem:[#allocation2 + $0x210] sm:$0xff]
    %v130 = vld [vmem:[#allocation2 + $0x218] sm:$0xff]
    %v131 = vld [vmem:[#allocation2 + $0x220] sm:$0xff]
    %v132 = vld [vmem:[#allocation2 + $0x228] sm:$0xff]
    %v133 = vld [vmem:[#allocation2 + $0x230] sm:$0xff]
    %v134 = vld [vmem:[#allocation2 + $0x238] sm:$0xff]
    %v135 = vld [vmem:[#allocation2 + $0x240] sm:$0xff]
    %v136 = vld [vmem:[#allocation2 + $0x248] sm:$0xff]
    %v137 = vld [vmem:[#allocation2 + $0x250] sm:$0xff]
    %v138 = vld [vmem:[#allocation2 + $0x258] sm:$0xff]
    %v139 = vld [vmem:[#allocation2 + $0x260] sm:$0xff]
    %v140 = vld [vmem:[#allocation2 + $0x268] sm:$0xff]
    %v141 = vld [vmem:[#allocation2 + $0x270] sm:$0xff]
    %v142 = vld [vmem:[#allocation2 + $0x278] sm:$0xff]
    %v143 = vld [vmem:[#allocation2 + $0x280] sm:$0x3]
    %v144 = vld [vmem:[#allocation2 + $0x288] sm:$0x3]
    %v145 = vld [vmem:[#allocation2 + $0x290] sm:$0x3]
    %v146 = vld [vmem:[#allocation2 + $0x298] sm:$0x3]
    %v147 = vld [vmem:[#allocation2 + $0x2a0] sm:$0x3]
    %v148 = vld [vmem:[#allocation2 + $0x2a8] sm:$0x3]
    %v149 = vld [vmem:[#allocation2 + $0x2b0] sm:$0x3]
    %v150 = vld [vmem:[#allocation2 + $0x2b8] sm:$0x3]
    %v151 = vld [vmem:[#allocation2 + $0x2c0] sm:$0x3]
    %v152 = vld [vmem:[#allocation2 + $0x2c8] sm:$0x3]
    %v153 = vld [vmem:[#allocation2 + $0x2d0] sm:$0x3]
    %v154 = vld [vmem:[#allocation2 + $0x2d8] sm:$0x3]
    %v155 = vld [vmem:[#allocation2 + $0x2e0] sm:$0x3]
    %v156 = vld [vmem:[#allocation2 + $0x2e8] sm:$0x3]
    %v157 = vld [vmem:[#allocation2 + $0x2f0] sm:$0x3]
    %v158 = vld [vmem:[#allocation2 + $0x2f8] sm:$0x3]
    %v159 = vperm.slane %v143, 1
    %v160 = vperm.slane %v144, 1
    %v161 = vperm.slane %v145, 1
    %v162 = vperm.slane %v146, 1
    %v163 = vperm.slane %v147, 1
    %v164 = vperm.slane %v148, 1
    %v165 = vperm.slane %v149, 1
    %v166 = vperm.slane %v150, 1
    %v167 = vperm.slane %v151, 1
    %v168 = vperm.slane %v152, 1
    %v169 = vperm.slane %v153, 1
    %v170 = vperm.slane %v154, 1
    %v171 = vperm.slane %v155, 1
    %v172 = vperm.slane %v156, 1
    %v173 = vperm.slane %v157, 1
    %v174 = vperm.slane %v158, 1
    %v175 = vmul.f32 %v63, %v159
    %v176 = vmul.f32 %v64, %v160
    %v177 = vmul.f32 %v65, %v161
    %v178 = vmul.f32 %v66, %v162
    %v179 = vmul.f32 %v67, %v163
    %v180 = vmul.f32 %v68, %v164
    %v181 = vmul.f32 %v69, %v165
    %v182 = vmul.f32 %v70, %v166
    %v183 = vmul.f32 %v71, %v167
    %v184 = vmul.f32 %v72, %v168
    %v185 = vmul.f32 %v73, %v169
    %v186 = vmul.f32 %v74, %v170
    %v187 = vmul.f32 %v75, %v171
    %v188 = vmul.f32 %v76, %v172
    %v189 = vmul.f32 %v77, %v173
    %v190 = vmul.f32 %v78, %v174
    %v191 = vmul.f32 %v79, %v159
    %v192 = vmul.f32 %v80, %v160
    %v193 = vmul.f32 %v81, %v161
    %v194 = vmul.f32 %v82, %v162
    %v195 = vmul.f32 %v83, %v163
    %v196 = vmul.f32 %v84, %v164
    %v197 = vmul.f32 %v85, %v165
    %v198 = vmul.f32 %v86, %v166
    %v199 = vmul.f32 %v87, %v167
    %v200 = vmul.f32 %v88, %v168
    %v201 = vmul.f32 %v89, %v169
    %v202 = vmul.f32 %v90, %v170
    %v203 = vmul.f32 %v91, %v171
    %v204 = vmul.f32 %v92, %v172
    %v205 = vmul.f32 %v93, %v173
    %v206 = vmul.f32 %v94, %v174
    %v207 = vmul.f32 %v95, %v159
    %v208 = vmul.f32 %v96, %v160
    %v209 = vmul.f32 %v97, %v161
    %v210 = vmul.f32 %v98, %v162
    %v211 = vmul.f32 %v99, %v163
    %v212 = vmul.f32 %v100, %v164
    %v213 = vmul.f32 %v101, %v165
    %v214 = vmul.f32 %v102, %v166
    %v215 = vmul.f32 %v103, %v167
    %v216 = vmul.f32 %v104, %v168
    %v217 = vmul.f32 %v105, %v169
    %v218 = vmul.f32 %v106, %v170
    %v219 = vmul.f32 %v107, %v171
    %v220 = vmul.f32 %v108, %v172
    %v221 = vmul.f32 %v109, %v173
    %v222 = vmul.f32 %v110, %v174
    %v223 = vmul.f32 %v111, %v159
    %v224 = vmul.f32 %v112, %v160
    %v225 = vmul.f32 %v113, %v161
    %v226 = vmul.f32 %v114, %v162
    %v227 = vmul.f32 %v115, %v163
    %v228 = vmul.f32 %v116, %v164
    %v229 = vmul.f32 %v117, %v165
    %v230 = vmul.f32 %v118, %v166
    %v231 = vmul.f32 %v119, %v167
    %v232 = vmul.f32 %v120, %v168
    %v233 = vmul.f32 %v121, %v169
    %v234 = vmul.f32 %v122, %v170
    %v235 = vmul.f32 %v123, %v171
    %v236 = vmul.f32 %v124, %v172
    %v237 = vmul.f32 %v125, %v173
    %v238 = vmul.f32 %v126, %v174
    %v239 = vmul.f32 %v127, %v159
    %v240 = vmul.f32 %v128, %v160
    %v241 = vmul.f32 %v129, %v161
    %v242 = vmul.f32 %v130, %v162
    %v243 = vmul.f32 %v131, %v163
    %v244 = vmul.f32 %v132, %v164
    %v245 = vmul.f32 %v133, %v165
    %v246 = vmul.f32 %v134, %v166
    %v247 = vmul.f32 %v135, %v167
    %v248 = vmul.f32 %v136, %v168
    %v249 = vmul.f32 %v137, %v169
    %v250 = vmul.f32 %v138, %v170
    %v251 = vmul.f32 %v139, %v171
    %v252 = vmul.f32 %v140, %v172
    %v253 = vmul.f32 %v141, %v173
    %v254 = vmul.f32 %v142, %v174
    %v255 = vmul.f32 %v143, %v159
    %v256 = vmul.f32 %v144, %v160
    %v257 = vmul.f32 %v145, %v161
    %v258 = vmul.f32 %v146, %v162
    %v259 = vmul.f32 %v147, %v163
    %v260 = vmul.f32 %v148, %v164
    %v261 = vmul.f32 %v149, %v165
    %v262 = vmul.f32 %v150, %v166
    %v263 = vmul.f32 %v151, %v167
    %v264 = vmul.f32 %v152, %v168
    %v265 = vmul.f32 %v153, %v169
    %v266 = vmul.f32 %v154, %v170
    %v267 = vmul.f32 %v155, %v171
    %v268 = vmul.f32 %v156, %v172
    %v269 = vmul.f32 %v157, %v173
    %v270 = vmul.f32 %v158, %v174
    %s271 = scalar_lea.vmem [#allocation2], 768
    %v272 = vld [vmem:[%s271] sm:$0xff]
    %v273 = vld [vmem:[%s271 + $0x8] sm:$0xff]
    %v274 = vld [vmem:[%s271 + $0x10] sm:$0xff]
    %v275 = vld [vmem:[%s271 + $0x18] sm:$0xff]
    %v276 = vld [vmem:[%s271 + $0x20] sm:$0xff]
    %v277 = vld [vmem:[%s271 + $0x28] sm:$0xff]
    %v278 = vld [vmem:[%s271 + $0x30] sm:$0xff]
    %v279 = vld [vmem:[%s271 + $0x38] sm:$0xff]
    %v280 = vld [vmem:[%s271 + $0x40] sm:$0xff]
    %v281 = vld [vmem:[%s271 + $0x48] sm:$0xff]
    %v282 = vld [vmem:[%s271 + $0x50] sm:$0xff]
    %v283 = vld [vmem:[%s271 + $0x58] sm:$0xff]
    %v284 = vld [vmem:[%s271 + $0x60] sm:$0xff]
    %v285 = vld [vmem:[%s271 + $0x68] sm:$0xff]
    %v286 = vld [vmem:[%s271 + $0x70] sm:$0xff]
    %v287 = vld [vmem:[%s271 + $0x78] sm:$0xff]
    %v288 = vld [vmem:[%s271 + $0x80] sm:$0xff]
    %v289 = vld [vmem:[%s271 + $0x88] sm:$0xff]
    %v290 = vld [vmem:[%s271 + $0x90] sm:$0xff]
    %v291 = vld [vmem:[%s271 + $0x98] sm:$0xff]
    %v292 = vld [vmem:[%s271 + $0xa0] sm:$0xff]
    %v293 = vld [vmem:[%s271 + $0xa8] sm:$0xff]
    %v294 = vld [vmem:[%s271 + $0xb0] sm:$0xff]
    %v295 = vld [vmem:[%s271 + $0xb8] sm:$0xff]
    %v296 = vld [vmem:[%s271 + $0xc0] sm:$0xff]
    %v297 = vld [vmem:[%s271 + $0xc8] sm:$0xff]
    %v298 = vld [vmem:[%s271 + $0xd0] sm:$0xff]
    %v299 = vld [vmem:[%s271 + $0xd8] sm:$0xff]
    %v300 = vld [vmem:[%s271 + $0xe0] sm:$0xff]
    %v301 = vld [vmem:[%s271 + $0xe8] sm:$0xff]
    %v302 = vld [vmem:[%s271 + $0xf0] sm:$0xff]
    %v303 = vld [vmem:[%s271 + $0xf8] sm:$0xff]
    %v304 = vld [vmem:[%s271 + $0x100] sm:$0xff]
    %v305 = vld [vmem:[%s271 + $0x108] sm:$0xff]
    %v306 = vld [vmem:[%s271 + $0x110] sm:$0xff]
    %v307 = vld [vmem:[%s271 + $0x118] sm:$0xff]
    %v308 = vld [vmem:[%s271 + $0x120] sm:$0xff]
    %v309 = vld [vmem:[%s271 + $0x128] sm:$0xff]
    %v310 = vld [vmem:[%s271 + $0x130] sm:$0xff]
    %v311 = vld [vmem:[%s271 + $0x138] sm:$0xff]
    %v312 = vld [vmem:[%s271 + $0x140] sm:$0xff]
    %v313 = vld [vmem:[%s271 + $0x148] sm:$0xff]
    %v314 = vld [vmem:[%s271 + $0x150] sm:$0xff]
    %v315 = vld [vmem:[%s271 + $0x158] sm:$0xff]
    %v316 = vld [vmem:[%s271 + $0x160] sm:$0xff]
    %v317 = vld [vmem:[%s271 + $0x168] sm:$0xff]
    %v318 = vld [vmem:[%s271 + $0x170] sm:$0xff]
    %v319 = vld [vmem:[%s271 + $0x178] sm:$0xff]
    %v320 = vld [vmem:[%s271 + $0x180] sm:$0xff]
    %v321 = vld [vmem:[%s271 + $0x188] sm:$0xff]
    %v322 = vld [vmem:[%s271 + $0x190] sm:$0xff]
    %v323 = vld [vmem:[%s271 + $0x198] sm:$0xff]
    %v324 = vld [vmem:[%s271 + $0x1a0] sm:$0xff]
    %v325 = vld [vmem:[%s271 + $0x1a8] sm:$0xff]
    %v326 = vld [vmem:[%s271 + $0x1b0] sm:$0xff]
    %v327 = vld [vmem:[%s271 + $0x1b8] sm:$0xff]
    %v328 = vld [vmem:[%s271 + $0x1c0] sm:$0xff]
    %v329 = vld [vmem:[%s271 + $0x1c8] sm:$0xff]
    %v330 = vld [vmem:[%s271 + $0x1d0] sm:$0xff]
    %v331 = vld [vmem:[%s271 + $0x1d8] sm:$0xff]
    %v332 = vld [vmem:[%s271 + $0x1e0] sm:$0xff]
    %v333 = vld [vmem:[%s271 + $0x1e8] sm:$0xff]
    %v334 = vld [vmem:[%s271 + $0x1f0] sm:$0xff]
    %v335 = vld [vmem:[%s271 + $0x1f8] sm:$0xff]
    %v336 = vld [vmem:[%s271 + $0x200] sm:$0xff]
    %v337 = vld [vmem:[%s271 + $0x208] sm:$0xff]
    %v338 = vld [vmem:[%s271 + $0x210] sm:$0xff]
    %v339 = vld [vmem:[%s271 + $0x218] sm:$0xff]
    %v340 = vld [vmem:[%s271 + $0x220] sm:$0xff]
    %v341 = vld [vmem:[%s271 + $0x228] sm:$0xff]
    %v342 = vld [vmem:[%s271 + $0x230] sm:$0xff]
    %v343 = vld [vmem:[%s271 + $0x238] sm:$0xff]
    %v344 = vld [vmem:[%s271 + $0x240] sm:$0xff]
    %v345 = vld [vmem:[%s271 + $0x248] sm:$0xff]
    %v346 = vld [vmem:[%s271 + $0x250] sm:$0xff]
    %v347 = vld [vmem:[%s271 + $0x258] sm:$0xff]
    %v348 = vld [vmem:[%s271 + $0x260] sm:$0xff]
    %v349 = vld [vmem:[%s271 + $0x268] sm:$0xff]
    %v350 = vld [vmem:[%s271 + $0x270] sm:$0xff]
    %v351 = vld [vmem:[%s271 + $0x278] sm:$0xff]
    %v352 = vld [vmem:[%s271 + $0x280] sm:$0x3]
    %v353 = vld [vmem:[%s271 + $0x288] sm:$0x3]
    %v354 = vld [vmem:[%s271 + $0x290] sm:$0x3]
    %v355 = vld [vmem:[%s271 + $0x298] sm:$0x3]
    %v356 = vld [vmem:[%s271 + $0x2a0] sm:$0x3]
    %v357 = vld [vmem:[%s271 + $0x2a8] sm:$0x3]
    %v358 = vld [vmem:[%s271 + $0x2b0] sm:$0x3]
    %v359 = vld [vmem:[%s271 + $0x2b8] sm:$0x3]
    %v360 = vld [vmem:[%s271 + $0x2c0] sm:$0x3]
    %v361 = vld [vmem:[%s271 + $0x2c8] sm:$0x3]
    %v362 = vld [vmem:[%s271 + $0x2d0] sm:$0x3]
    %v363 = vld [vmem:[%s271 + $0x2d8] sm:$0x3]
    %v364 = vld [vmem:[%s271 + $0x2e0] sm:$0x3]
    %v365 = vld [vmem:[%s271 + $0x2e8] sm:$0x3]
    %v366 = vld [vmem:[%s271 + $0x2f0] sm:$0x3]
    %v367 = vld [vmem:[%s271 + $0x2f8] sm:$0x3]
    %v368 = vperm.slane %v352, 1
    %v369 = vperm.slane %v353, 1
    %v370 = vperm.slane %v354, 1
    %v371 = vperm.slane %v355, 1
    %v372 = vperm.slane %v356, 1
    %v373 = vperm.slane %v357, 1
    %v374 = vperm.slane %v358, 1
    %v375 = vperm.slane %v359, 1
    %v376 = vperm.slane %v360, 1
    %v377 = vperm.slane %v361, 1
    %v378 = vperm.slane %v362, 1
    %v379 = vperm.slane %v363, 1
    %v380 = vperm.slane %v364, 1
    %v381 = vperm.slane %v365, 1
    %v382 = vperm.slane %v366, 1
    %v383 = vperm.slane %v367, 1
    %v384 = vmul.f32 %v272, %v368
    %v385 = vmul.f32 %v273, %v369
    %v386 = vmul.f32 %v274, %v370
    %v387 = vmul.f32 %v275, %v371
    %v388 = vmul.f32 %v276, %v372
    %v389 = vmul.f32 %v277, %v373
    %v390 = vmul.f32 %v278, %v374
    %v391 = vmul.f32 %v279, %v375
    %v392 = vmul.f32 %v280, %v376
    %v393 = vmul.f32 %v281, %v377
    %v394 = vmul.f32 %v282, %v378
    %v395 = vmul.f32 %v283, %v379
    %v396 = vmul.f32 %v284, %v380
    %v397 = vmul.f32 %v285, %v381
    %v398 = vmul.f32 %v286, %v382
    %v399 = vmul.f32 %v287, %v383
    %v400 = vmul.f32 %v288, %v368
    %v401 = vmul.f32 %v289, %v369
    %v402 = vmul.f32 %v290, %v370
    %v403 = vmul.f32 %v291, %v371
    %v404 = vmul.f32 %v292, %v372
    %v405 = vmul.f32 %v293, %v373
    %v406 = vmul.f32 %v294, %v374
    %v407 = vmul.f32 %v295, %v375
    %v408 = vmul.f32 %v296, %v376
    %v409 = vmul.f32 %v297, %v377
    %v410 = vmul.f32 %v298, %v378
    %v411 = vmul.f32 %v299, %v379
    %v412 = vmul.f32 %v300, %v380
    %v413 = vmul.f32 %v301, %v381
    %v414 = vmul.f32 %v302, %v382
    %v415 = vmul.f32 %v303, %v383
    %v416 = vmul.f32 %v304, %v368
    %v417 = vmul.f32 %v305, %v369
    %v418 = vmul.f32 %v306, %v370
    %v419 = vmul.f32 %v307, %v371
    %v420 = vmul.f32 %v308, %v372
    %v421 = vmul.f32 %v309, %v373
    %v422 = vmul.f32 %v310, %v374
    %v423 = vmul.f32 %v311, %v375
    %v424 = vmul.f32 %v312, %v376
    %v425 = vmul.f32 %v313, %v377
    %v426 = vmul.f32 %v314, %v378
    %v427 = vmul.f32 %v315, %v379
    %v428 = vmul.f32 %v316, %v380
    %v429 = vmul.f32 %v317, %v381
    %v430 = vmul.f32 %v318, %v382
    %v431 = vmul.f32 %v319, %v383
    %v432 = vmul.f32 %v320, %v368
    %v433 = vmul.f32 %v321, %v369
    %v434 = vmul.f32 %v322, %v370
    %v435 = vmul.f32 %v323, %v371
    %v436 = vmul.f32 %v324, %v372
    %v437 = vmul.f32 %v325, %v373
    %v438 = vmul.f32 %v326, %v374
    %v439 = vmul.f32 %v327, %v375
    %v440 = vmul.f32 %v328, %v376
    %v441 = vmul.f32 %v329, %v377
    %v442 = vmul.f32 %v330, %v378
    %v443 = vmul.f32 %v331, %v379
    %v444 = vmul.f32 %v332, %v380
    %v445 = vmul.f32 %v333, %v381
    %v446 = vmul.f32 %v334, %v382
    %v447 = vmul.f32 %v335, %v383
    %v448 = vmul.f32 %v336, %v368
    %v449 = vmul.f32 %v337, %v369
    %v450 = vmul.f32 %v338, %v370
    %v451 = vmul.f32 %v339, %v371
    %v452 = vmul.f32 %v340, %v372
    %v453 = vmul.f32 %v341, %v373
    %v454 = vmul.f32 %v342, %v374
    %v455 = vmul.f32 %v343, %v375
    %v456 = vmul.f32 %v344, %v376
    %v457 = vmul.f32 %v345, %v377
    %v458 = vmul.f32 %v346, %v378
    %v459 = vmul.f32 %v347, %v379
    %v460 = vmul.f32 %v348, %v380
    %v461 = vmul.f32 %v349, %v381
    %v462 = vmul.f32 %v350, %v382
    %v463 = vmul.f32 %v351, %v383
    %v464 = vmul.f32 %v352, %v368
    %v465 = vmul.f32 %v353, %v369
    %v466 = vmul.f32 %v354, %v370
    %v467 = vmul.f32 %v355, %v371
    %v468 = vmul.f32 %v356, %v372
    %v469 = vmul.f32 %v357, %v373
    %v470 = vmul.f32 %v358, %v374
    %v471 = vmul.f32 %v359, %v375
    %v472 = vmul.f32 %v360, %v376
    %v473 = vmul.f32 %v361, %v377
    %v474 = vmul.f32 %v362, %v378
    %v475 = vmul.f32 %v363, %v379
    %v476 = vmul.f32 %v364, %v380
    %v477 = vmul.f32 %v365, %v381
    %v478 = vmul.f32 %v366, %v382
    %v479 = vmul.f32 %v367, %v383
    %v480 = vadd.f32 %v175, %v384
    %v481 = vadd.f32 %v176, %v385
    %v482 = vadd.f32 %v177, %v386
    %v483 = vadd.f32 %v178, %v387
    %v484 = vadd.f32 %v179, %v388
    %v485 = vadd.f32 %v180, %v389
    %v486 = vadd.f32 %v181, %v390
    %v487 = vadd.f32 %v182, %v391
    %v488 = vadd.f32 %v183, %v392
    %v489 = vadd.f32 %v184, %v393
    %v490 = vadd.f32 %v185, %v394
    %v491 = vadd.f32 %v186, %v395
    %v492 = vadd.f32 %v187, %v396
    %v493 = vadd.f32 %v188, %v397
    %v494 = vadd.f32 %v189, %v398
    %v495 = vadd.f32 %v190, %v399
    %v496 = vadd.f32 %v191, %v400
    %v497 = vadd.f32 %v192, %v401
    %v498 = vadd.f32 %v193, %v402
    %v499 = vadd.f32 %v194, %v403
    %v500 = vadd.f32 %v195, %v404
    %v501 = vadd.f32 %v196, %v405
    %v502 = vadd.f32 %v197, %v406
    %v503 = vadd.f32 %v198, %v407
    %v504 = vadd.f32 %v199, %v408
    %v505 = vadd.f32 %v200, %v409
    %v506 = vadd.f32 %v201, %v410
    %v507 = vadd.f32 %v202, %v411
    %v508 = vadd.f32 %v203, %v412
    %v509 = vadd.f32 %v204, %v413
    %v510 = vadd.f32 %v205, %v414
    %v511 = vadd.f32 %v206, %v415
    %v512 = vadd.f32 %v207, %v416
    %v513 = vadd.f32 %v208, %v417
    %v514 = vadd.f32 %v209, %v418
    %v515 = vadd.f32 %v210, %v419
    %v516 = vadd.f32 %v211, %v420
    %v517 = vadd.f32 %v212, %v421
    %v518 = vadd.f32 %v213, %v422
    %v519 = vadd.f32 %v214, %v423
    %v520 = vadd.f32 %v215, %v424
    %v521 = vadd.f32 %v216, %v425
    %v522 = vadd.f32 %v217, %v426
    %v523 = vadd.f32 %v218, %v427
    %v524 = vadd.f32 %v219, %v428
    %v525 = vadd.f32 %v220, %v429
    %v526 = vadd.f32 %v221, %v430
    %v527 = vadd.f32 %v222, %v431
    %v528 = vadd.f32 %v223, %v432
    %v529 = vadd.f32 %v224, %v433
    %v530 = vadd.f32 %v225, %v434
    %v531 = vadd.f32 %v226, %v435
    %v532 = vadd.f32 %v227, %v436
    %v533 = vadd.f32 %v228, %v437
    %v534 = vadd.f32 %v229, %v438
    %v535 = vadd.f32 %v230, %v439
    %v536 = vadd.f32 %v231, %v440
    %v537 = vadd.f32 %v232, %v441
    %v538 = vadd.f32 %v233, %v442
    %v539 = vadd.f32 %v234, %v443
    %v540 = vadd.f32 %v235, %v444
    %v541 = vadd.f32 %v236, %v445
    %v542 = vadd.f32 %v237, %v446
    %v543 = vadd.f32 %v238, %v447
    %v544 = vadd.f32 %v239, %v448
    %v545 = vadd.f32 %v240, %v449
    %v546 = vadd.f32 %v241, %v450
    %v547 = vadd.f32 %v242, %v451
    %v548 = vadd.f32 %v243, %v452
    %v549 = vadd.f32 %v244, %v453
    %v550 = vadd.f32 %v245, %v454
    %v551 = vadd.f32 %v246, %v455
    %v552 = vadd.f32 %v247, %v456
    %v553 = vadd.f32 %v248, %v457
    %v554 = vadd.f32 %v249, %v458
    %v555 = vadd.f32 %v250, %v459
    %v556 = vadd.f32 %v251, %v460
    %v557 = vadd.f32 %v252, %v461
    %v558 = vadd.f32 %v253, %v462
    %v559 = vadd.f32 %v254, %v463
    %v560 = vadd.f32 %v255, %v464
    %v561 = vadd.f32 %v256, %v465
    %v562 = vadd.f32 %v257, %v466
    %v563 = vadd.f32 %v258, %v467
    %v564 = vadd.f32 %v259, %v468
    %v565 = vadd.f32 %v260, %v469
    %v566 = vadd.f32 %v261, %v470
    %v567 = vadd.f32 %v262, %v471
    %v568 = vadd.f32 %v263, %v472
    %v569 = vadd.f32 %v264, %v473
    %v570 = vadd.f32 %v265, %v474
    %v571 = vadd.f32 %v266, %v475
    %v572 = vadd.f32 %v267, %v476
    %v573 = vadd.f32 %v268, %v477
    %v574 = vadd.f32 %v269, %v478
    %v575 = vadd.f32 %v270, %v479
    %v576 = vadd.f32 %v143, %v352
    %v577 = vadd.f32 %v144, %v353
    %v578 = vadd.f32 %v145, %v354
    %v579 = vadd.f32 %v146, %v355
    %v580 = vadd.f32 %v147, %v356
    %v581 = vadd.f32 %v148, %v357
    %v582 = vadd.f32 %v149, %v358
    %v583 = vadd.f32 %v150, %v359
    %v584 = vadd.f32 %v151, %v360
    %v585 = vadd.f32 %v152, %v361
    %v586 = vadd.f32 %v153, %v362
    %v587 = vadd.f32 %v154, %v363
    %v588 = vadd.f32 %v155, %v364
    %v589 = vadd.f32 %v156, %v365
    %v590 = vadd.f32 %v157, %v366
    %v591 = vadd.f32 %v158, %v367
    %s592 = scalar_lea.vmem [#allocation2], 1536
    %v593 = vld [vmem:[%s592] sm:$0xff]
    %v594 = vld [vmem:[%s592 + $0x8] sm:$0xff]
    %v595 = vld [vmem:[%s592 + $0x10] sm:$0xff]
    %v596 = vld [vmem:[%s592 + $0x18] sm:$0xff]
    %v597 = vld [vmem:[%s592 + $0x20] sm:$0xff]
    %v598 = vld [vmem:[%s592 + $0x28] sm:$0xff]
    %v599 = vld [vmem:[%s592 + $0x30] sm:$0xff]
    %v600 = vld [vmem:[%s592 + $0x38] sm:$0xff]
    %v601 = vld [vmem:[%s592 + $0x40] sm:$0xff]
    %v602 = vld [vmem:[%s592 + $0x48] sm:$0xff]
    %v603 = vld [vmem:[%s592 + $0x50] sm:$0xff]
    %v604 = vld [vmem:[%s592 + $0x58] sm:$0xff]
    %v605 = vld [vmem:[%s592 + $0x60] sm:$0xff]
    %v606 = vld [vmem:[%s592 + $0x68] sm:$0xff]
    %v607 = vld [vmem:[%s592 + $0x70] sm:$0xff]
    %v608 = vld [vmem:[%s592 + $0x78] sm:$0xff]
    %v609 = vld [vmem:[%s592 + $0x80] sm:$0xff]
    %v610 = vld [vmem:[%s592 + $0x88] sm:$0xff]
    %v611 = vld [vmem:[%s592 + $0x90] sm:$0xff]
    %v612 = vld [vmem:[%s592 + $0x98] sm:$0xff]
    %v613 = vld [vmem:[%s592 + $0xa0] sm:$0xff]
    %v614 = vld [vmem:[%s592 + $0xa8] sm:$0xff]
    %v615 = vld [vmem:[%s592 + $0xb0] sm:$0xff]
    %v616 = vld [vmem:[%s592 + $0xb8] sm:$0xff]
    %v617 = vld [vmem:[%s592 + $0xc0] sm:$0xff]
    %v618 = vld [vmem:[%s592 + $0xc8] sm:$0xff]
    %v619 = vld [vmem:[%s592 + $0xd0] sm:$0xff]
    %v620 = vld [vmem:[%s592 + $0xd8] sm:$0xff]
    %v621 = vld [vmem:[%s592 + $0xe0] sm:$0xff]
    %v622 = vld [vmem:[%s592 + $0xe8] sm:$0xff]
    %v623 = vld [vmem:[%s592 + $0xf0] sm:$0xff]
    %v624 = vld [vmem:[%s592 + $0xf8] sm:$0xff]
    %v625 = vld [vmem:[%s592 + $0x100] sm:$0xff]
    %v626 = vld [vmem:[%s592 + $0x108] sm:$0xff]
    %v627 = vld [vmem:[%s592 + $0x110] sm:$0xff]
    %v628 = vld [vmem:[%s592 + $0x118] sm:$0xff]
    %v629 = vld [vmem:[%s592 + $0x120] sm:$0xff]
    %v630 = vld [vmem:[%s592 + $0x128] sm:$0xff]
    %v631 = vld [vmem:[%s592 + $0x130] sm:$0xff]
    %v632 = vld [vmem:[%s592 + $0x138] sm:$0xff]
    %v633 = vld [vmem:[%s592 + $0x140] sm:$0xff]
    %v634 = vld [vmem:[%s592 + $0x148] sm:$0xff]
    %v635 = vld [vmem:[%s592 + $0x150] sm:$0xff]
    %v636 = vld [vmem:[%s592 + $0x158] sm:$0xff]
    %v637 = vld [vmem:[%s592 + $0x160] sm:$0xff]
    %v638 = vld [vmem:[%s592 + $0x168] sm:$0xff]
    %v639 = vld [vmem:[%s592 + $0x170] sm:$0xff]
    %v640 = vld [vmem:[%s592 + $0x178] sm:$0xff]
    %v641 = vld [vmem:[%s592 + $0x180] sm:$0xff]
    %v642 = vld [vmem:[%s592 + $0x188] sm:$0xff]
    %v643 = vld [vmem:[%s592 + $0x190] sm:$0xff]
    %v644 = vld [vmem:[%s592 + $0x198] sm:$0xff]
    %v645 = vld [vmem:[%s592 + $0x1a0] sm:$0xff]
    %v646 = vld [vmem:[%s592 + $0x1a8] sm:$0xff]
    %v647 = vld [vmem:[%s592 + $0x1b0] sm:$0xff]
    %v648 = vld [vmem:[%s592 + $0x1b8] sm:$0xff]
    %v649 = vld [vmem:[%s592 + $0x1c0] sm:$0xff]
    %v650 = vld [vmem:[%s592 + $0x1c8] sm:$0xff]
    %v651 = vld [vmem:[%s592 + $0x1d0] sm:$0xff]
    %v652 = vld [vmem:[%s592 + $0x1d8] sm:$0xff]
    %v653 = vld [vmem:[%s592 + $0x1e0] sm:$0xff]
    %v654 = vld [vmem:[%s592 + $0x1e8] sm:$0xff]
    %v655 = vld [vmem:[%s592 + $0x1f0] sm:$0xff]
    %v656 = vld [vmem:[%s592 + $0x1f8] sm:$0xff]
    %v657 = vld [vmem:[%s592 + $0x200] sm:$0xff]
    %v658 = vld [vmem:[%s592 + $0x208] sm:$0xff]
    %v659 = vld [vmem:[%s592 + $0x210] sm:$0xff]
    %v660 = vld [vmem:[%s592 + $0x218] sm:$0xff]
    %v661 = vld [vmem:[%s592 + $0x220] sm:$0xff]
    %v662 = vld [vmem:[%s592 + $0x228] sm:$0xff]
    %v663 = vld [vmem:[%s592 + $0x230] sm:$0xff]
    %v664 = vld [vmem:[%s592 + $0x238] sm:$0xff]
    %v665 = vld [vmem:[%s592 + $0x240] sm:$0xff]
    %v666 = vld [vmem:[%s592 + $0x248] sm:$0xff]
    %v667 = vld [vmem:[%s592 + $0x250] sm:$0xff]
    %v668 = vld [vmem:[%s592 + $0x258] sm:$0xff]
    %v669 = vld [vmem:[%s592 + $0x260] sm:$0xff]
    %v670 = vld [vmem:[%s592 + $0x268] sm:$0xff]
    %v671 = vld [vmem:[%s592 + $0x270] sm:$0xff]
    %v672 = vld [vmem:[%s592 + $0x278] sm:$0xff]
    %v673 = vld [vmem:[%s592 + $0x280] sm:$0x3]
    %v674 = vld [vmem:[%s592 + $0x288] sm:$0x3]
    %v675 = vld [vmem:[%s592 + $0x290] sm:$0x3]
    %v676 = vld [vmem:[%s592 + $0x298] sm:$0x3]
    %v677 = vld [vmem:[%s592 + $0x2a0] sm:$0x3]
    %v678 = vld [vmem:[%s592 + $0x2a8] sm:$0x3]
    %v679 = vld [vmem:[%s592 + $0x2b0] sm:$0x3]
    %v680 = vld [vmem:[%s592 + $0x2b8] sm:$0x3]
    %v681 = vld [vmem:[%s592 + $0x2c0] sm:$0x3]
    %v682 = vld [vmem:[%s592 + $0x2c8] sm:$0x3]
    %v683 = vld [vmem:[%s592 + $0x2d0] sm:$0x3]
    %v684 = vld [vmem:[%s592 + $0x2d8] sm:$0x3]
    %v685 = vld [vmem:[%s592 + $0x2e0] sm:$0x3]
    %v686 = vld [vmem:[%s592 + $0x2e8] sm:$0x3]
    %v687 = vld [vmem:[%s592 + $0x2f0] sm:$0x3]
    %v688 = vld [vmem:[%s592 + $0x2f8] sm:$0x3]
    %v689 = vperm.slane %v673, 1
    %v690 = vperm.slane %v674, 1
    %v691 = vperm.slane %v675, 1
    %v692 = vperm.slane %v676, 1
    %v693 = vperm.slane %v677, 1
    %v694 = vperm.slane %v678, 1
    %v695 = vperm.slane %v679, 1
    %v696 = vperm.slane %v680, 1
    %v697 = vperm.slane %v681, 1
    %v698 = vperm.slane %v682, 1
    %v699 = vperm.slane %v683, 1
    %v700 = vperm.slane %v684, 1
    %v701 = vperm.slane %v685, 1
    %v702 = vperm.slane %v686, 1
    %v703 = vperm.slane %v687, 1
    %v704 = vperm.slane %v688, 1
    %v705 = vmul.f32 %v593, %v689
    %v706 = vmul.f32 %v594, %v690
    %v707 = vmul.f32 %v595, %v691
    %v708 = vmul.f32 %v596, %v692
    %v709 = vmul.f32 %v597, %v693
    %v710 = vmul.f32 %v598, %v694
    %v711 = vmul.f32 %v599, %v695
    %v712 = vmul.f32 %v600, %v696
    %v713 = vmul.f32 %v601, %v697
    %v714 = vmul.f32 %v602, %v698
    %v715 = vmul.f32 %v603, %v699
    %v716 = vmul.f32 %v604, %v700
    %v717 = vmul.f32 %v605, %v701
    %v718 = vmul.f32 %v606, %v702
    %v719 = vmul.f32 %v607, %v703
    %v720 = vmul.f32 %v608, %v704
    %v721 = vmul.f32 %v609, %v689
    %v722 = vmul.f32 %v610, %v690
    %v723 = vmul.f32 %v611, %v691
    %v724 = vmul.f32 %v612, %v692
    %v725 = vmul.f32 %v613, %v693
    %v726 = vmul.f32 %v614, %v694
    %v727 = vmul.f32 %v615, %v695
    %v728 = vmul.f32 %v616, %v696
    %v729 = vmul.f32 %v617, %v697
    %v730 = vmul.f32 %v618, %v698
    %v731 = vmul.f32 %v619, %v699
    %v732 = vmul.f32 %v620, %v700
    %v733 = vmul.f32 %v621, %v701
    %v734 = vmul.f32 %v622, %v702
    %v735 = vmul.f32 %v623, %v703
    %v736 = vmul.f32 %v624, %v704
    %v737 = vmul.f32 %v625, %v689
    %v738 = vmul.f32 %v626, %v690
    %v739 = vmul.f32 %v627, %v691
    %v740 = vmul.f32 %v628, %v692
    %v741 = vmul.f32 %v629, %v693
    %v742 = vmul.f32 %v630, %v694
    %v743 = vmul.f32 %v631, %v695
    %v744 = vmul.f32 %v632, %v696
    %v745 = vmul.f32 %v633, %v697
    %v746 = vmul.f32 %v634, %v698
    %v747 = vmul.f32 %v635, %v699
    %v748 = vmul.f32 %v636, %v700
    %v749 = vmul.f32 %v637, %v701
    %v750 = vmul.f32 %v638, %v702
    %v751 = vmul.f32 %v639, %v703
    %v752 = vmul.f32 %v640, %v704
    %v753 = vmul.f32 %v641, %v689
    %v754 = vmul.f32 %v642, %v690
    %v755 = vmul.f32 %v643, %v691
    %v756 = vmul.f32 %v644, %v692
    %v757 = vmul.f32 %v645, %v693
    %v758 = vmul.f32 %v646, %v694
    %v759 = vmul.f32 %v647, %v695
    %v760 = vmul.f32 %v648, %v696
    %v761 = vmul.f32 %v649, %v697
    %v762 = vmul.f32 %v650, %v698
    %v763 = vmul.f32 %v651, %v699
    %v764 = vmul.f32 %v652, %v700
    %v765 = vmul.f32 %v653, %v701
    %v766 = vmul.f32 %v654, %v702
    %v767 = vmul.f32 %v655, %v703
    %v768 = vmul.f32 %v656, %v704
    %v769 = vmul.f32 %v657, %v689
    %v770 = vmul.f32 %v658, %v690
    %v771 = vmul.f32 %v659, %v691
    %v772 = vmul.f32 %v660, %v692
    %v773 = vmul.f32 %v661, %v693
    %v774 = vmul.f32 %v662, %v694
    %v775 = vmul.f32 %v663, %v695
    %v776 = vmul.f32 %v664, %v696
    %v777 = vmul.f32 %v665, %v697
    %v778 = vmul.f32 %v666, %v698
    %v779 = vmul.f32 %v667, %v699
    %v780 = vmul.f32 %v668, %v700
    %v781 = vmul.f32 %v669, %v701
    %v782 = vmul.f32 %v670, %v702
    %v783 = vmul.f32 %v671, %v703
    %v784 = vmul.f32 %v672, %v704
    %v785 = vmul.f32 %v673, %v689
    %v786 = vmul.f32 %v674, %v690
    %v787 = vmul.f32 %v675, %v691
    %v788 = vmul.f32 %v676, %v692
    %v789 = vmul.f32 %v677, %v693
    %v790 = vmul.f32 %v678, %v694
    %v791 = vmul.f32 %v679, %v695
    %v792 = vmul.f32 %v680, %v696
    %v793 = vmul.f32 %v681, %v697
    %v794 = vmul.f32 %v682, %v698
    %v795 = vmul.f32 %v683, %v699
    %v796 = vmul.f32 %v684, %v700
    %v797 = vmul.f32 %v685, %v701
    %v798 = vmul.f32 %v686, %v702
    %v799 = vmul.f32 %v687, %v703
    %v800 = vmul.f32 %v688, %v704
    %v801 = vadd.f32 %v480, %v705
    %v802 = vadd.f32 %v481, %v706
    %v803 = vadd.f32 %v482, %v707
    %v804 = vadd.f32 %v483, %v708
    %v805 = vadd.f32 %v484, %v709
    %v806 = vadd.f32 %v485, %v710
    %v807 = vadd.f32 %v486, %v711
    %v808 = vadd.f32 %v487, %v712
    %v809 = vadd.f32 %v488, %v713
    %v810 = vadd.f32 %v489, %v714
    %v811 = vadd.f32 %v490, %v715
    %v812 = vadd.f32 %v491, %v716
    %v813 = vadd.f32 %v492, %v717
    %v814 = vadd.f32 %v493, %v718
    %v815 = vadd.f32 %v494, %v719
    %v816 = vadd.f32 %v495, %v720
    %v817 = vadd.f32 %v496, %v721
    %v818 = vadd.f32 %v497, %v722
    %v819 = vadd.f32 %v498, %v723
    %v820 = vadd.f32 %v499, %v724
    %v821 = vadd.f32 %v500, %v725
    %v822 = vadd.f32 %v501, %v726
    %v823 = vadd.f32 %v502, %v727
    %v824 = vadd.f32 %v503, %v728
    %v825 = vadd.f32 %v504, %v729
    %v826 = vadd.f32 %v505, %v730
    %v827 = vadd.f32 %v506, %v731
    %v828 = vadd.f32 %v507, %v732
    %v829 = vadd.f32 %v508, %v733
    %v830 = vadd.f32 %v509, %v734
    %v831 = vadd.f32 %v510, %v735
    %v832 = vadd.f32 %v511, %v736
    %v833 = vadd.f32 %v512, %v737
    %v834 = vadd.f32 %v513, %v738
    %v835 = vadd.f32 %v514, %v739
    %v836 = vadd.f32 %v515, %v740
    %v837 = vadd.f32 %v516, %v741
    %v838 = vadd.f32 %v517, %v742
    %v839 = vadd.f32 %v518, %v743
    %v840 = vadd.f32 %v519, %v744
    %v841 = vadd.f32 %v520, %v745
    %v842 = vadd.f32 %v521, %v746
    %v843 = vadd.f32 %v522, %v747
    %v844 = vadd.f32 %v523, %v748
    %v845 = vadd.f32 %v524, %v749
    %v846 = vadd.f32 %v525, %v750
    %v847 = vadd.f32 %v526, %v751
    %v848 = vadd.f32 %v527, %v752
    %v849 = vadd.f32 %v528, %v753
    %v850 = vadd.f32 %v529, %v754
    %v851 = vadd.f32 %v530, %v755
    %v852 = vadd.f32 %v531, %v756
    %v853 = vadd.f32 %v532, %v757
    %v854 = vadd.f32 %v533, %v758
    %v855 = vadd.f32 %v534, %v759
    %v856 = vadd.f32 %v535, %v760
    %v857 = vadd.f32 %v536, %v761
    %v858 = vadd.f32 %v537, %v762
    %v859 = vadd.f32 %v538, %v763
    %v860 = vadd.f32 %v539, %v764
    %v861 = vadd.f32 %v540, %v765
    %v862 = vadd.f32 %v541, %v766
    %v863 = vadd.f32 %v542, %v767
    %v864 = vadd.f32 %v543, %v768
    %v865 = vadd.f32 %v544, %v769
    %v866 = vadd.f32 %v545, %v770
    %v867 = vadd.f32 %v546, %v771
    %v868 = vadd.f32 %v547, %v772
    %v869 = vadd.f32 %v548, %v773
    %v870 = vadd.f32 %v549, %v774
    %v871 = vadd.f32 %v550, %v775
    %v872 = vadd.f32 %v551, %v776
    %v873 = vadd.f32 %v552, %v777
    %v874 = vadd.f32 %v553, %v778
    %v875 = vadd.f32 %v554, %v779
    %v876 = vadd.f32 %v555, %v780
    %v877 = vadd.f32 %v556, %v781
    %v878 = vadd.f32 %v557, %v782
    %v879 = vadd.f32 %v558, %v783
    %v880 = vadd.f32 %v559, %v784
    %v881 = vadd.f32 %v560, %v785
    %v882 = vadd.f32 %v561, %v786
    %v883 = vadd.f32 %v562, %v787
    %v884 = vadd.f32 %v563, %v788
    %v885 = vadd.f32 %v564, %v789
    %v886 = vadd.f32 %v565, %v790
    %v887 = vadd.f32 %v566, %v791
    %v888 = vadd.f32 %v567, %v792
    %v889 = vadd.f32 %v568, %v793
    %v890 = vadd.f32 %v569, %v794
    %v891 = vadd.f32 %v570, %v795
    %v892 = vadd.f32 %v571, %v796
    %v893 = vadd.f32 %v572, %v797
    %v894 = vadd.f32 %v573, %v798
    %v895 = vadd.f32 %v574, %v799
    %v896 = vadd.f32 %v575, %v800
    %v897 = vadd.f32 %v576, %v673
    %v898 = vadd.f32 %v577, %v674
    %v899 = vadd.f32 %v578, %v675
    %v900 = vadd.f32 %v579, %v676
    %v901 = vadd.f32 %v580, %v677
    %v902 = vadd.f32 %v581, %v678
    %v903 = vadd.f32 %v582, %v679
    %v904 = vadd.f32 %v583, %v680
    %v905 = vadd.f32 %v584, %v681
    %v906 = vadd.f32 %v585, %v682
    %v907 = vadd.f32 %v586, %v683
    %v908 = vadd.f32 %v587, %v684
    %v909 = vadd.f32 %v588, %v685
    %v910 = vadd.f32 %v589, %v686
    %v911 = vadd.f32 %v590, %v687
    %v912 = vadd.f32 %v591, %v688
    %v913 = vadd.f32 %v897, 1e-08
    %v914 = vadd.f32 %v898, 1e-08
    %v915 = vadd.f32 %v899, 1e-08
    %v916 = vadd.f32 %v900, 1e-08
    %v917 = vadd.f32 %v901, 1e-08
    %v918 = vadd.f32 %v902, 1e-08
    %v919 = vadd.f32 %v903, 1e-08
    %v920 = vadd.f32 %v904, 1e-08
    %v921 = vadd.f32 %v905, 1e-08
    %v922 = vadd.f32 %v906, 1e-08
    %v923 = vadd.f32 %v907, 1e-08
    %v924 = vadd.f32 %v908, 1e-08
    %v925 = vadd.f32 %v909, 1e-08
    %v926 = vadd.f32 %v910, 1e-08
    %v927 = vadd.f32 %v911, 1e-08
    %v928 = vadd.f32 %v912, 1e-08
    %v929 = vrcp.pop %v913
    %v930 = vmul.f32 %v913, %v929
    %v931 = vsub.f32 1.0, %v930
    %v932 = vmul.f32 %v929, %v931
    %v933 = vadd.f32 %v929, %v932
    %vm934 = vweird.f32 %v913
    %vm935 = vweird.f32 %v929
    %vm936 = vmor %vm934, %vm935
    %v937 = vsel %vm936, %v929, %v933
    %v938 = vand.u32 2147483647, %v913
    %vm939 = vcmp.eq.f32.partialorder %v938, 8.507059e+37
    %v940 = vand.u32 %v913, 2147483648
    %v941 = vor.u32 1.1754944e-38, %v940
    %v942 = vsel %vm939, %v941, %v937
    %v943 = vmul.f32 1.0, %v942
    %v944 = vrcp.pop %v914
    %v945 = vmul.f32 %v914, %v944
    %v946 = vsub.f32 1.0, %v945
    %v947 = vmul.f32 %v944, %v946
    %v948 = vadd.f32 %v944, %v947
    %vm949 = vweird.f32 %v914
    %vm950 = vweird.f32 %v944
    %vm951 = vmor %vm949, %vm950
    %v952 = vsel %vm951, %v944, %v948
    %v953 = vand.u32 2147483647, %v914
    %vm954 = vcmp.eq.f32.partialorder %v953, 8.507059e+37
    %v955 = vand.u32 %v914, 2147483648
    %v956 = vor.u32 1.1754944e-38, %v955
    %v957 = vsel %vm954, %v956, %v952
    %v958 = vmul.f32 1.0, %v957
    %v959 = vrcp.pop %v915
    %v960 = vmul.f32 %v915, %v959
    %v961 = vsub.f32 1.0, %v960
    %v962 = vmul.f32 %v959, %v961
    %v963 = vadd.f32 %v959, %v962
    %vm964 = vweird.f32 %v915
    %vm965 = vweird.f32 %v959
    %vm966 = vmor %vm964, %vm965
    %v967 = vsel %vm966, %v959, %v963
    %v968 = vand.u32 2147483647, %v915
    %vm969 = vcmp.eq.f32.partialorder %v968, 8.507059e+37
    %v970 = vand.u32 %v915, 2147483648
    %v971 = vor.u32 1.1754944e-38, %v970
    %v972 = vsel %vm969, %v971, %v967
    %v973 = vmul.f32 1.0, %v972
    %v974 = vrcp.pop %v916
    %v975 = vmul.f32 %v916, %v974
    %v976 = vsub.f32 1.0, %v975
    %v977 = vmul.f32 %v974, %v976
    %v978 = vadd.f32 %v974, %v977
    %vm979 = vweird.f32 %v916
    %vm980 = vweird.f32 %v974
    %vm981 = vmor %vm979, %vm980
    %v982 = vsel %vm981, %v974, %v978
    %v983 = vand.u32 2147483647, %v916
    %vm984 = vcmp.eq.f32.partialorder %v983, 8.507059e+37
    %v985 = vand.u32 %v916, 2147483648
    %v986 = vor.u32 1.1754944e-38, %v985
    %v987 = vsel %vm984, %v986, %v982
    %v988 = vmul.f32 1.0, %v987
    %v989 = vrcp.pop %v917
    %v990 = vmul.f32 %v917, %v989
    %v991 = vsub.f32 1.0, %v990
    %v992 = vmul.f32 %v989, %v991
    %v993 = vadd.f32 %v989, %v992
    %vm994 = vweird.f32 %v917
    %vm995 = vweird.f32 %v989
    %vm996 = vmor %vm994, %vm995
    %v997 = vsel %vm996, %v989, %v993
    %v998 = vand.u32 2147483647, %v917
    %vm999 = vcmp.eq.f32.partialorder %v998, 8.507059e+37
    %v1000 = vand.u32 %v917, 2147483648
    %v1001 = vor.u32 1.1754944e-38, %v1000
    %v1002 = vsel %vm999, %v1001, %v997
    %v1003 = vmul.f32 1.0, %v1002
    %v1004 = vrcp.pop %v918
    %v1005 = vmul.f32 %v918, %v1004
    %v1006 = vsub.f32 1.0, %v1005
    %v1007 = vmul.f32 %v1004, %v1006
    %v1008 = vadd.f32 %v1004, %v1007
    %vm1009 = vweird.f32 %v918
    %vm1010 = vweird.f32 %v1004
    %vm1011 = vmor %vm1009, %vm1010
    %v1012 = vsel %vm1011, %v1004, %v1008
    %v1013 = vand.u32 2147483647, %v918
    %vm1014 = vcmp.eq.f32.partialorder %v1013, 8.507059e+37
    %v1015 = vand.u32 %v918, 2147483648
    %v1016 = vor.u32 1.1754944e-38, %v1015
    %v1017 = vsel %vm1014, %v1016, %v1012
    %v1018 = vmul.f32 1.0, %v1017
    %v1019 = vrcp.pop %v919
    %v1020 = vmul.f32 %v919, %v1019
    %v1021 = vsub.f32 1.0, %v1020
    %v1022 = vmul.f32 %v1019, %v1021
    %v1023 = vadd.f32 %v1019, %v1022
    %vm1024 = vweird.f32 %v919
    %vm1025 = vweird.f32 %v1019
    %vm1026 = vmor %vm1024, %vm1025
    %v1027 = vsel %vm1026, %v1019, %v1023
    %v1028 = vand.u32 2147483647, %v919
    %vm1029 = vcmp.eq.f32.partialorder %v1028, 8.507059e+37
    %v1030 = vand.u32 %v919, 2147483648
    %v1031 = vor.u32 1.1754944e-38, %v1030
    %v1032 = vsel %vm1029, %v1031, %v1027
    %v1033 = vmul.f32 1.0, %v1032
    %v1034 = vrcp.pop %v920
    %v1035 = vmul.f32 %v920, %v1034
    %v1036 = vsub.f32 1.0, %v1035
    %v1037 = vmul.f32 %v1034, %v1036
    %v1038 = vadd.f32 %v1034, %v1037
    %vm1039 = vweird.f32 %v920
    %vm1040 = vweird.f32 %v1034
    %vm1041 = vmor %vm1039, %vm1040
    %v1042 = vsel %vm1041, %v1034, %v1038
    %v1043 = vand.u32 2147483647, %v920
    %vm1044 = vcmp.eq.f32.partialorder %v1043, 8.507059e+37
    %v1045 = vand.u32 %v920, 2147483648
    %v1046 = vor.u32 1.1754944e-38, %v1045
    %v1047 = vsel %vm1044, %v1046, %v1042
    %v1048 = vmul.f32 1.0, %v1047
    %v1049 = vrcp.pop %v921
    %v1050 = vmul.f32 %v921, %v1049
    %v1051 = vsub.f32 1.0, %v1050
    %v1052 = vmul.f32 %v1049, %v1051
    %v1053 = vadd.f32 %v1049, %v1052
    %vm1054 = vweird.f32 %v921
    %vm1055 = vweird.f32 %v1049
    %vm1056 = vmor %vm1054, %vm1055
    %v1057 = vsel %vm1056, %v1049, %v1053
    %v1058 = vand.u32 2147483647, %v921
    %vm1059 = vcmp.eq.f32.partialorder %v1058, 8.507059e+37
    %v1060 = vand.u32 %v921, 2147483648
    %v1061 = vor.u32 1.1754944e-38, %v1060
    %v1062 = vsel %vm1059, %v1061, %v1057
    %v1063 = vmul.f32 1.0, %v1062
    %v1064 = vrcp.pop %v922
    %v1065 = vmul.f32 %v922, %v1064
    %v1066 = vsub.f32 1.0, %v1065
    %v1067 = vmul.f32 %v1064, %v1066
    %v1068 = vadd.f32 %v1064, %v1067
    %vm1069 = vweird.f32 %v922
    %vm1070 = vweird.f32 %v1064
    %vm1071 = vmor %vm1069, %vm1070
    %v1072 = vsel %vm1071, %v1064, %v1068
    %v1073 = vand.u32 2147483647, %v922
    %vm1074 = vcmp.eq.f32.partialorder %v1073, 8.507059e+37
    %v1075 = vand.u32 %v922, 2147483648
    %v1076 = vor.u32 1.1754944e-38, %v1075
    %v1077 = vsel %vm1074, %v1076, %v1072
    %v1078 = vmul.f32 1.0, %v1077
    %v1079 = vrcp.pop %v923
    %v1080 = vmul.f32 %v923, %v1079
    %v1081 = vsub.f32 1.0, %v1080
    %v1082 = vmul.f32 %v1079, %v1081
    %v1083 = vadd.f32 %v1079, %v1082
    %vm1084 = vweird.f32 %v923
    %vm1085 = vweird.f32 %v1079
    %vm1086 = vmor %vm1084, %vm1085
    %v1087 = vsel %vm1086, %v1079, %v1083
    %v1088 = vand.u32 2147483647, %v923
    %vm1089 = vcmp.eq.f32.partialorder %v1088, 8.507059e+37
    %v1090 = vand.u32 %v923, 2147483648
    %v1091 = vor.u32 1.1754944e-38, %v1090
    %v1092 = vsel %vm1089, %v1091, %v1087
    %v1093 = vmul.f32 1.0, %v1092
    %v1094 = vrcp.pop %v924
    %v1095 = vmul.f32 %v924, %v1094
    %v1096 = vsub.f32 1.0, %v1095
    %v1097 = vmul.f32 %v1094, %v1096
    %v1098 = vadd.f32 %v1094, %v1097
    %vm1099 = vweird.f32 %v924
    %vm1100 = vweird.f32 %v1094
    %vm1101 = vmor %vm1099, %vm1100
    %v1102 = vsel %vm1101, %v1094, %v1098
    %v1103 = vand.u32 2147483647, %v924
    %vm1104 = vcmp.eq.f32.partialorder %v1103, 8.507059e+37
    %v1105 = vand.u32 %v924, 2147483648
    %v1106 = vor.u32 1.1754944e-38, %v1105
    %v1107 = vsel %vm1104, %v1106, %v1102
    %v1108 = vmul.f32 1.0, %v1107
    %v1109 = vrcp.pop %v925
    %v1110 = vmul.f32 %v925, %v1109
    %v1111 = vsub.f32 1.0, %v1110
    %v1112 = vmul.f32 %v1109, %v1111
    %v1113 = vadd.f32 %v1109, %v1112
    %vm1114 = vweird.f32 %v925
    %vm1115 = vweird.f32 %v1109
    %vm1116 = vmor %vm1114, %vm1115
    %v1117 = vsel %vm1116, %v1109, %v1113
    %v1118 = vand.u32 2147483647, %v925
    %vm1119 = vcmp.eq.f32.partialorder %v1118, 8.507059e+37
    %v1120 = vand.u32 %v925, 2147483648
    %v1121 = vor.u32 1.1754944e-38, %v1120
    %v1122 = vsel %vm1119, %v1121, %v1117
    %v1123 = vmul.f32 1.0, %v1122
    %v1124 = vrcp.pop %v926
    %v1125 = vmul.f32 %v926, %v1124
    %v1126 = vsub.f32 1.0, %v1125
    %v1127 = vmul.f32 %v1124, %v1126
    %v1128 = vadd.f32 %v1124, %v1127
    %vm1129 = vweird.f32 %v926
    %vm1130 = vweird.f32 %v1124
    %vm1131 = vmor %vm1129, %vm1130
    %v1132 = vsel %vm1131, %v1124, %v1128
    %v1133 = vand.u32 2147483647, %v926
    %vm1134 = vcmp.eq.f32.partialorder %v1133, 8.507059e+37
    %v1135 = vand.u32 %v926, 2147483648
    %v1136 = vor.u32 1.1754944e-38, %v1135
    %v1137 = vsel %vm1134, %v1136, %v1132
    %v1138 = vmul.f32 1.0, %v1137
    %v1139 = vrcp.pop %v927
    %v1140 = vmul.f32 %v927, %v1139
    %v1141 = vsub.f32 1.0, %v1140
    %v1142 = vmul.f32 %v1139, %v1141
    %v1143 = vadd.f32 %v1139, %v1142
    %vm1144 = vweird.f32 %v927
    %vm1145 = vweird.f32 %v1139
    %vm1146 = vmor %vm1144, %vm1145
    %v1147 = vsel %vm1146, %v1139, %v1143
    %v1148 = vand.u32 2147483647, %v927
    %vm1149 = vcmp.eq.f32.partialorder %v1148, 8.507059e+37
    %v1150 = vand.u32 %v927, 2147483648
    %v1151 = vor.u32 1.1754944e-38, %v1150
    %v1152 = vsel %vm1149, %v1151, %v1147
    %v1153 = vmul.f32 1.0, %v1152
    %v1154 = vrcp.pop %v928
    %v1155 = vmul.f32 %v928, %v1154
    %v1156 = vsub.f32 1.0, %v1155
    %v1157 = vmul.f32 %v1154, %v1156
    %v1158 = vadd.f32 %v1154, %v1157
    %vm1159 = vweird.f32 %v928
    %vm1160 = vweird.f32 %v1154
    %vm1161 = vmor %vm1159, %vm1160
    %v1162 = vsel %vm1161, %v1154, %v1158
    %v1163 = vand.u32 2147483647, %v928
    %vm1164 = vcmp.eq.f32.partialorder %v1163, 8.507059e+37
    %v1165 = vand.u32 %v928, 2147483648
    %v1166 = vor.u32 1.1754944e-38, %v1165
    %v1167 = vsel %vm1164, %v1166, %v1162
    %v1168 = vmul.f32 1.0, %v1167
    %v1169 = vmul.f32 %v897, %v943
    %v1170 = vmul.f32 %v898, %v958
    %v1171 = vmul.f32 %v899, %v973
    %v1172 = vmul.f32 %v900, %v988
    %v1173 = vmul.f32 %v901, %v1003
    %v1174 = vmul.f32 %v902, %v1018
    %v1175 = vmul.f32 %v903, %v1033
    %v1176 = vmul.f32 %v904, %v1048
    %v1177 = vmul.f32 %v905, %v1063
    %v1178 = vmul.f32 %v906, %v1078
    %v1179 = vmul.f32 %v907, %v1093
    %v1180 = vmul.f32 %v908, %v1108
    %v1181 = vmul.f32 %v909, %v1123
    %v1182 = vmul.f32 %v910, %v1138
    %v1183 = vmul.f32 %v911, %v1153
    %v1184 = vmul.f32 %v912, %v1168
    %v1185 = vperm.slane %v943, 1
    %v1186 = vperm.slane %v958, 1
    %v1187 = vperm.slane %v973, 1
    %v1188 = vperm.slane %v988, 1
    %v1189 = vperm.slane %v1003, 1
    %v1190 = vperm.slane %v1018, 1
    %v1191 = vperm.slane %v1033, 1
    %v1192 = vperm.slane %v1048, 1
    %v1193 = vperm.slane %v1063, 1
    %v1194 = vperm.slane %v1078, 1
    %v1195 = vperm.slane %v1093, 1
    %v1196 = vperm.slane %v1108, 1
    %v1197 = vperm.slane %v1123, 1
    %v1198 = vperm.slane %v1138, 1
    %v1199 = vperm.slane %v1153, 1
    %v1200 = vperm.slane %v1168, 1
    %v1201 = vmul.f32 %v801, %v1185
    %v1202 = vmul.f32 %v802, %v1186
    %v1203 = vmul.f32 %v803, %v1187
    %v1204 = vmul.f32 %v804, %v1188
    %v1205 = vmul.f32 %v805, %v1189
    %v1206 = vmul.f32 %v806, %v1190
    %v1207 = vmul.f32 %v807, %v1191
    %v1208 = vmul.f32 %v808, %v1192
    %v1209 = vmul.f32 %v809, %v1193
    %v1210 = vmul.f32 %v810, %v1194
    %v1211 = vmul.f32 %v811, %v1195
    %v1212 = vmul.f32 %v812, %v1196
    %v1213 = vmul.f32 %v813, %v1197
    %v1214 = vmul.f32 %v814, %v1198
    %v1215 = vmul.f32 %v815, %v1199
    %v1216 = vmul.f32 %v816, %v1200
    %v1217 = vmul.f32 %v817, %v1185
    %v1218 = vmul.f32 %v818, %v1186
    %v1219 = vmul.f32 %v819, %v1187
    %v1220 = vmul.f32 %v820, %v1188
    %v1221 = vmul.f32 %v821, %v1189
    %v1222 = vmul.f32 %v822, %v1190
    %v1223 = vmul.f32 %v823, %v1191
    %v1224 = vmul.f32 %v824, %v1192
    %v1225 = vmul.f32 %v825, %v1193
    %v1226 = vmul.f32 %v826, %v1194
    %v1227 = vmul.f32 %v827, %v1195
    %v1228 = vmul.f32 %v828, %v1196
    %v1229 = vmul.f32 %v829, %v1197
    %v1230 = vmul.f32 %v830, %v1198
    %v1231 = vmul.f32 %v831, %v1199
    %v1232 = vmul.f32 %v832, %v1200
    %v1233 = vmul.f32 %v833, %v1185
    %v1234 = vmul.f32 %v834, %v1186
    %v1235 = vmul.f32 %v835, %v1187
    %v1236 = vmul.f32 %v836, %v1188
    %v1237 = vmul.f32 %v837, %v1189
    %v1238 = vmul.f32 %v838, %v1190
    %v1239 = vmul.f32 %v839, %v1191
    %v1240 = vmul.f32 %v840, %v1192
    %v1241 = vmul.f32 %v841, %v1193
    %v1242 = vmul.f32 %v842, %v1194
    %v1243 = vmul.f32 %v843, %v1195
    %v1244 = vmul.f32 %v844, %v1196
    %v1245 = vmul.f32 %v845, %v1197
    %v1246 = vmul.f32 %v846, %v1198
    %v1247 = vmul.f32 %v847, %v1199
    %v1248 = vmul.f32 %v848, %v1200
    %v1249 = vmul.f32 %v849, %v1185
    %v1250 = vmul.f32 %v850, %v1186
    %v1251 = vmul.f32 %v851, %v1187
    %v1252 = vmul.f32 %v852, %v1188
    %v1253 = vmul.f32 %v853, %v1189
    %v1254 = vmul.f32 %v854, %v1190
    %v1255 = vmul.f32 %v855, %v1191
    %v1256 = vmul.f32 %v856, %v1192
    %v1257 = vmul.f32 %v857, %v1193
    %v1258 = vmul.f32 %v858, %v1194
    %v1259 = vmul.f32 %v859, %v1195
    %v1260 = vmul.f32 %v860, %v1196
    %v1261 = vmul.f32 %v861, %v1197
    %v1262 = vmul.f32 %v862, %v1198
    %v1263 = vmul.f32 %v863, %v1199
    %v1264 = vmul.f32 %v864, %v1200
    %v1265 = vmul.f32 %v865, %v1185
    %v1266 = vmul.f32 %v866, %v1186
    %v1267 = vmul.f32 %v867, %v1187
    %v1268 = vmul.f32 %v868, %v1188
    %v1269 = vmul.f32 %v869, %v1189
    %v1270 = vmul.f32 %v870, %v1190
    %v1271 = vmul.f32 %v871, %v1191
    %v1272 = vmul.f32 %v872, %v1192
    %v1273 = vmul.f32 %v873, %v1193
    %v1274 = vmul.f32 %v874, %v1194
    %v1275 = vmul.f32 %v875, %v1195
    %v1276 = vmul.f32 %v876, %v1196
    %v1277 = vmul.f32 %v877, %v1197
    %v1278 = vmul.f32 %v878, %v1198
    %v1279 = vmul.f32 %v879, %v1199
    %v1280 = vmul.f32 %v880, %v1200
    %v1281 = vmul.f32 %v881, %v1185
    %v1282 = vmul.f32 %v882, %v1186
    %v1283 = vmul.f32 %v883, %v1187
    %v1284 = vmul.f32 %v884, %v1188
    %v1285 = vmul.f32 %v885, %v1189
    %v1286 = vmul.f32 %v886, %v1190
    %v1287 = vmul.f32 %v887, %v1191
    %v1288 = vmul.f32 %v888, %v1192
    %v1289 = vmul.f32 %v889, %v1193
    %v1290 = vmul.f32 %v890, %v1194
    %v1291 = vmul.f32 %v891, %v1195
    %v1292 = vmul.f32 %v892, %v1196
    %v1293 = vmul.f32 %v893, %v1197
    %v1294 = vmul.f32 %v894, %v1198
    %v1295 = vmul.f32 %v895, %v1199
    %v1296 = vmul.f32 %v896, %v1200
    %v1297 = vld [vmem:[#allocation5] sm:$0x77]
    %v1298 = vld [vmem:[#allocation5 + $0x8] sm:$0x77]
    %v1299 = vld [vmem:[#allocation5 + $0x10] sm:$0x77]
    %v1300 = vld [vmem:[#allocation5 + $0x18] sm:$0x77]
    %v1301 = vld [vmem:[#allocation5 + $0x20] sm:$0x77]
    %v1302 = vld [vmem:[#allocation5 + $0x28] sm:$0x77]
    %v1303 = vld [vmem:[#allocation5 + $0x30] sm:$0x77]
    %v1304 = vld [vmem:[#allocation5 + $0x38] sm:$0x77]
    %v1305 = vperm.slane %v1169, 1
    %v1306 = vperm.slane %v1170, 1
    %v1307 = vperm.slane %v1171, 1
    %v1308 = vperm.slane %v1172, 1
    %v1309 = vperm.slane %v1173, 1
    %v1310 = vperm.slane %v1174, 1
    %v1311 = vperm.slane %v1175, 1
    %v1312 = vperm.slane %v1176, 1
    %v1313 = vperm.slane %v1177, 1
    %v1314 = vperm.slane %v1178, 1
    %v1315 = vperm.slane %v1179, 1
    %v1316 = vperm.slane %v1180, 1
    %v1317 = vperm.slane %v1181, 1
    %v1318 = vperm.slane %v1182, 1
    %v1319 = vperm.slane %v1183, 1
    %v1320 = vperm.slane %v1184, 1
    %v1337 = vrot.slane %v1306, 4
    %v1338 = vrot.slane %v1308, 4
    %v1339 = vrot.slane %v1310, 4
    %v1340 = vrot.slane %v1312, 4
    %v1341 = vrot.slane %v1314, 4
    %v1342 = vrot.slane %v1316, 4
    %v1343 = vrot.slane %v1318, 4
    %v1344 = vrot.slane %v1320, 4
    %vm1345 = vcmask 1043456
    %v1346 = vsel %vm1345, %v1305, %v1337
    %v1347 = vsel %vm1345, %v1307, %v1338
    %v1348 = vsel %vm1345, %v1309, %v1339
    %v1349 = vsel %vm1345, %v1311, %v1340
    %v1350 = vsel %vm1345, %v1313, %v1341
    %v1351 = vsel %vm1345, %v1315, %v1342
    %v1352 = vsel %vm1345, %v1317, %v1343
    %v1353 = vsel %vm1345, %v1319, %v1344
    %v1362 = vmul.f32 %v1297, %v1346
    %v1363 = vmul.f32 %v1298, %v1347
    %v1364 = vmul.f32 %v1299, %v1348
    %v1365 = vmul.f32 %v1300, %v1349
    %v1366 = vmul.f32 %v1301, %v1350
    %v1367 = vmul.f32 %v1302, %v1351
    %v1368 = vmul.f32 %v1303, %v1352
    %v1369 = vmul.f32 %v1304, %v1353
    %1378 = vst [vmem:[#allocation1] ss:$2 sm:$0xff] %v1362
    %s1379 = scalar_lea.vmem [#allocation1], 16
    %1380 = vst [vmem:[%s1379] ss:$2 sm:$0xff] %v1363
    %s1381 = scalar_lea.vmem [#allocation1], 32
    %1382 = vst [vmem:[%s1381] ss:$2 sm:$0xff] %v1364
    %s1383 = scalar_lea.vmem [#allocation1], 48
    %1384 = vst [vmem:[%s1383] ss:$2 sm:$0xff] %v1365
    %v1385 = vld.sshfl [vmem:[#allocation1] sm:$0xff pattern:$0x75316420]
    %v1386 = vld.sshfl [vmem:[#allocation1 + $0x8] sm:$0xff pattern:$0x75316420]
    %v1387 = vld.sshfl [vmem:[#allocation1 + $0x10] sm:$0xff pattern:$0x75316420]
    %v1388 = vld.sshfl [vmem:[#allocation1 + $0x18] sm:$0xff pattern:$0x75316420]
    %v1389 = vld.sshfl [vmem:[#allocation1 + $0x20] sm:$0xff pattern:$0x75316420]
    %v1390 = vld.sshfl [vmem:[#allocation1 + $0x28] sm:$0xff pattern:$0x75316420]
    %v1391 = vld.sshfl [vmem:[#allocation1 + $0x30] sm:$0xff pattern:$0x75316420]
    %v1392 = vld.sshfl [vmem:[#allocation1 + $0x38] sm:$0xff pattern:$0x75316420]
    %1393 = vst [vmem:[#allocation1] ss:$2 sm:$0xff] %v1366
    %1394 = vst [vmem:[%s1379] ss:$2 sm:$0xff] %v1367
    %1395 = vst [vmem:[%s1381] ss:$2 sm:$0xff] %v1368
    %1396 = vst [vmem:[%s1383] ss:$2 sm:$0xff] %v1369
    %v1397 = vld.sshfl [vmem:[#allocation1] sm:$0xff pattern:$0x75316420]
    %v1398 = vld.sshfl [vmem:[#allocation1 + $0x8] sm:$0xff pattern:$0x75316420]
    %v1399 = vld.sshfl [vmem:[#allocation1 + $0x10] sm:$0xff pattern:$0x75316420]
    %v1400 = vld.sshfl [vmem:[#allocation1 + $0x18] sm:$0xff pattern:$0x75316420]
    %v1401 = vld.sshfl [vmem:[#allocation1 + $0x20] sm:$0xff pattern:$0x75316420]
    %v1402 = vld.sshfl [vmem:[#allocation1 + $0x28] sm:$0xff pattern:$0x75316420]
    %v1403 = vld.sshfl [vmem:[#allocation1 + $0x30] sm:$0xff pattern:$0x75316420]
    %v1404 = vld.sshfl [vmem:[#allocation1 + $0x38] sm:$0xff pattern:$0x75316420]
    %v1405 = vrot.slane %v1385, 2
    %v1406 = vrot.slane %v1386, 2
    %v1407 = vrot.slane %v1387, 2
    %v1408 = vrot.slane %v1388, 2
    %v1409 = vrot.slane %v1389, 2
    %v1410 = vrot.slane %v1390, 2
    %v1411 = vrot.slane %v1391, 2
    %v1412 = vrot.slane %v1392, 2
    %v1413 = vrot.slane %v1397, 2
    %v1414 = vrot.slane %v1398, 2
    %v1415 = vrot.slane %v1399, 2
    %v1416 = vrot.slane %v1400, 2
    %v1417 = vrot.slane %v1401, 2
    %v1418 = vrot.slane %v1402, 2
    %v1419 = vrot.slane %v1403, 2
    %v1420 = vrot.slane %v1404, 2
    %v1437 = vsub.f32 %v1265, %v1405
    %v1438 = vsub.f32 %v1266, %v1406
    %v1439 = vsub.f32 %v1267, %v1407
    %v1440 = vsub.f32 %v1268, %v1408
    %v1441 = vsub.f32 %v1269, %v1409
    %v1442 = vsub.f32 %v1270, %v1410
    %v1443 = vsub.f32 %v1271, %v1411
    %v1444 = vsub.f32 %v1272, %v1412
    %v1445 = vsub.f32 %v1273, %v1413
    %v1446 = vsub.f32 %v1274, %v1414
    %v1447 = vsub.f32 %v1275, %v1415
    %v1448 = vsub.f32 %v1276, %v1416
    %v1449 = vsub.f32 %v1277, %v1417
    %v1450 = vsub.f32 %v1278, %v1418
    %v1451 = vsub.f32 %v1279, %v1419
    %v1452 = vsub.f32 %v1280, %v1420
    %v1453 = vsub.f32 %v1281, %v1405
    %v1454 = vsub.f32 %v1282, %v1406
    %v1455 = vsub.f32 %v1283, %v1407
    %v1456 = vsub.f32 %v1284, %v1408
    %v1457 = vsub.f32 %v1285, %v1409
    %v1458 = vsub.f32 %v1286, %v1410
    %v1459 = vsub.f32 %v1287, %v1411
    %v1460 = vsub.f32 %v1288, %v1412
    %v1461 = vsub.f32 %v1289, %v1413
    %v1462 = vsub.f32 %v1290, %v1414
    %v1463 = vsub.f32 %v1291, %v1415
    %v1464 = vsub.f32 %v1292, %v1416
    %v1465 = vsub.f32 %v1293, %v1417
    %v1466 = vsub.f32 %v1294, %v1418
    %v1467 = vsub.f32 %v1295, %v1419
    %v1468 = vsub.f32 %v1296, %v1420
    %1477 = vst [vmem:[#allocation1] ss:$2 sm:$0xff] %v1297
    %s1478 = scalar_lea.vmem [#allocation1], 16
    %1479 = vst [vmem:[%s1478] ss:$2 sm:$0xff] %v1298
    %s1480 = scalar_lea.vmem [#allocation1], 32
    %1481 = vst [vmem:[%s1480] ss:$2 sm:$0xff] %v1299
    %s1482 = scalar_lea.vmem [#allocation1], 48
    %1483 = vst [vmem:[%s1482] ss:$2 sm:$0xff] %v1300
    %v1484 = vld.sshfl [vmem:[#allocation1] sm:$0xff pattern:$0x75316420]
    %v1485 = vld.sshfl [vmem:[#allocation1 + $0x8] sm:$0xff pattern:$0x75316420]
    %v1486 = vld.sshfl [vmem:[#allocation1 + $0x10] sm:$0xff pattern:$0x75316420]
    %v1487 = vld.sshfl [vmem:[#allocation1 + $0x18] sm:$0xff pattern:$0x75316420]
    %v1488 = vld.sshfl [vmem:[#allocation1 + $0x20] sm:$0xff pattern:$0x75316420]
    %v1489 = vld.sshfl [vmem:[#allocation1 + $0x28] sm:$0xff pattern:$0x75316420]
    %v1490 = vld.sshfl [vmem:[#allocation1 + $0x30] sm:$0xff pattern:$0x75316420]
    %v1491 = vld.sshfl [vmem:[#allocation1 + $0x38] sm:$0xff pattern:$0x75316420]
    %1492 = vst [vmem:[#allocation1] ss:$2 sm:$0xff] %v1301
    %1493 = vst [vmem:[%s1478] ss:$2 sm:$0xff] %v1302
    %1494 = vst [vmem:[%s1480] ss:$2 sm:$0xff] %v1303
    %1495 = vst [vmem:[%s1482] ss:$2 sm:$0xff] %v1304
    %v1496 = vld.sshfl [vmem:[#allocation1] sm:$0xff pattern:$0x75316420]
    %v1497 = vld.sshfl [vmem:[#allocation1 + $0x8] sm:$0xff pattern:$0x75316420]
    %v1498 = vld.sshfl [vmem:[#allocation1 + $0x10] sm:$0xff pattern:$0x75316420]
    %v1499 = vld.sshfl [vmem:[#allocation1 + $0x18] sm:$0xff pattern:$0x75316420]
    %v1500 = vld.sshfl [vmem:[#allocation1 + $0x20] sm:$0xff pattern:$0x75316420]
    %v1501 = vld.sshfl [vmem:[#allocation1 + $0x28] sm:$0xff pattern:$0x75316420]
    %v1502 = vld.sshfl [vmem:[#allocation1 + $0x30] sm:$0xff pattern:$0x75316420]
    %v1503 = vld.sshfl [vmem:[#allocation1 + $0x38] sm:$0xff pattern:$0x75316420]
    %v1504 = vrot.slane %v1484, 2
    %v1505 = vrot.slane %v1485, 2
    %v1506 = vrot.slane %v1486, 2
    %v1507 = vrot.slane %v1487, 2
    %v1508 = vrot.slane %v1488, 2
    %v1509 = vrot.slane %v1489, 2
    %v1510 = vrot.slane %v1490, 2
    %v1511 = vrot.slane %v1491, 2
    %v1512 = vrot.slane %v1496, 2
    %v1513 = vrot.slane %v1497, 2
    %v1514 = vrot.slane %v1498, 2
    %v1515 = vrot.slane %v1499, 2
    %v1516 = vrot.slane %v1500, 2
    %v1517 = vrot.slane %v1501, 2
    %v1518 = vrot.slane %v1502, 2
    %v1519 = vrot.slane %v1503, 2
    %v1536 = vmul.f32 %v1265, %v1504
    %v1537 = vmul.f32 %v1266, %v1505
    %v1538 = vmul.f32 %v1267, %v1506
    %v1539 = vmul.f32 %v1268, %v1507
    %v1540 = vmul.f32 %v1269, %v1508
    %v1541 = vmul.f32 %v1270, %v1509
    %v1542 = vmul.f32 %v1271, %v1510
    %v1543 = vmul.f32 %v1272, %v1511
    %v1544 = vmul.f32 %v1273, %v1512
    %v1545 = vmul.f32 %v1274, %v1513
    %v1546 = vmul.f32 %v1275, %v1514
    %v1547 = vmul.f32 %v1276, %v1515
    %v1548 = vmul.f32 %v1277, %v1516
    %v1549 = vmul.f32 %v1278, %v1517
    %v1550 = vmul.f32 %v1279, %v1518
    %v1551 = vmul.f32 %v1280, %v1519
    %v1552 = vmul.f32 %v1281, %v1504
    %v1553 = vmul.f32 %v1282, %v1505
    %v1554 = vmul.f32 %v1283, %v1506
    %v1555 = vmul.f32 %v1284, %v1507
    %v1556 = vmul.f32 %v1285, %v1508
    %v1557 = vmul.f32 %v1286, %v1509
    %v1558 = vmul.f32 %v1287, %v1510
    %v1559 = vmul.f32 %v1288, %v1511
    %v1560 = vmul.f32 %v1289, %v1512
    %v1561 = vmul.f32 %v1290, %v1513
    %v1562 = vmul.f32 %v1291, %v1514
    %v1563 = vmul.f32 %v1292, %v1515
    %v1564 = vmul.f32 %v1293, %v1516
    %v1565 = vmul.f32 %v1294, %v1517
    %v1566 = vmul.f32 %v1295, %v1518
    %v1567 = vmul.f32 %v1296, %v1519
    %vm1600 = vcmask 1041408
    %v1601 = vrot.slane %v1536, 6
    %v1602 = vrot.slane %v1552, 6
    %v1603 = vsel %vm1600, %v1601, %v1602
    %v1604 = vrot.slane %v1537, 6
    %v1605 = vrot.slane %v1553, 6
    %v1606 = vsel %vm1600, %v1604, %v1605
    %v1607 = vrot.slane %v1538, 6
    %v1608 = vrot.slane %v1554, 6
    %v1609 = vsel %vm1600, %v1607, %v1608
    %v1610 = vrot.slane %v1539, 6
    %v1611 = vrot.slane %v1555, 6
    %v1612 = vsel %vm1600, %v1610, %v1611
    %v1613 = vrot.slane %v1540, 6
    %v1614 = vrot.slane %v1556, 6
    %v1615 = vsel %vm1600, %v1613, %v1614
    %v1616 = vrot.slane %v1541, 6
    %v1617 = vrot.slane %v1557, 6
    %v1618 = vsel %vm1600, %v1616, %v1617
    %v1619 = vrot.slane %v1542, 6
    %v1620 = vrot.slane %v1558, 6
    %v1621 = vsel %vm1600, %v1619, %v1620
    %v1622 = vrot.slane %v1543, 6
    %v1623 = vrot.slane %v1559, 6
    %v1624 = vsel %vm1600, %v1622, %v1623
    %v1625 = vrot.slane %v1544, 6
    %v1626 = vrot.slane %v1560, 6
    %v1627 = vsel %vm1600, %v1625, %v1626
    %v1628 = vrot.slane %v1545, 6
    %v1629 = vrot.slane %v1561, 6
    %v1630 = vsel %vm1600, %v1628, %v1629
    %v1631 = vrot.slane %v1546, 6
    %v1632 = vrot.slane %v1562, 6
    %v1633 = vsel %vm1600, %v1631, %v1632
    %v1634 = vrot.slane %v1547, 6
    %v1635 = vrot.slane %v1563, 6
    %v1636 = vsel %vm1600, %v1634, %v1635
    %v1637 = vrot.slane %v1548, 6
    %v1638 = vrot.slane %v1564, 6
    %v1639 = vsel %vm1600, %v1637, %v1638
    %v1640 = vrot.slane %v1549, 6
    %v1641 = vrot.slane %v1565, 6
    %v1642 = vsel %vm1600, %v1640, %v1641
    %v1643 = vrot.slane %v1550, 6
    %v1644 = vrot.slane %v1566, 6
    %v1645 = vsel %vm1600, %v1643, %v1644
    %v1646 = vrot.slane %v1551, 6
    %v1647 = vrot.slane %v1567, 6
    %v1648 = vsel %vm1600, %v1646, %v1647
    %vm1665 = vcmask 1042432
    %v1666 = vsel %vm1665, %v1603, 0.0
    %v1667 = vrot.slane %v1666, 4
    %v1668 = vadd.f32 %v1666, %v1667
    %v1669 = vrot.slane %v1668, 2
    %v1670 = vadd.f32 %v1668, %v1669
    %v1671 = vrot.slane %v1670, 1
    %v1672 = vadd.f32 %v1670, %v1671
    %v1673 = vsel %vm1665, %v1606, 0.0
    %v1674 = vrot.slane %v1673, 4
    %v1675 = vadd.f32 %v1673, %v1674
    %v1676 = vrot.slane %v1675, 2
    %v1677 = vadd.f32 %v1675, %v1676
    %v1678 = vrot.slane %v1677, 1
    %v1679 = vadd.f32 %v1677, %v1678
    %v1680 = vsel %vm1665, %v1609, 0.0
    %v1681 = vrot.slane %v1680, 4
    %v1682 = vadd.f32 %v1680, %v1681
    %v1683 = vrot.slane %v1682, 2
    %v1684 = vadd.f32 %v1682, %v1683
    %v1685 = vrot.slane %v1684, 1
    %v1686 = vadd.f32 %v1684, %v1685
    %v1687 = vsel %vm1665, %v1612, 0.0
    %v1688 = vrot.slane %v1687, 4
    %v1689 = vadd.f32 %v1687, %v1688
    %v1690 = vrot.slane %v1689, 2
    %v1691 = vadd.f32 %v1689, %v1690
    %v1692 = vrot.slane %v1691, 1
    %v1693 = vadd.f32 %v1691, %v1692
    %v1694 = vsel %vm1665, %v1615, 0.0
    %v1695 = vrot.slane %v1694, 4
    %v1696 = vadd.f32 %v1694, %v1695
    %v1697 = vrot.slane %v1696, 2
    %v1698 = vadd.f32 %v1696, %v1697
    %v1699 = vrot.slane %v1698, 1
    %v1700 = vadd.f32 %v1698, %v1699
    %v1701 = vsel %vm1665, %v1618, 0.0
    %v1702 = vrot.slane %v1701, 4
    %v1703 = vadd.f32 %v1701, %v1702
    %v1704 = vrot.slane %v1703, 2
    %v1705 = vadd.f32 %v1703, %v1704
    %v1706 = vrot.slane %v1705, 1
    %v1707 = vadd.f32 %v1705, %v1706
    %v1708 = vsel %vm1665, %v1621, 0.0
    %v1709 = vrot.slane %v1708, 4
    %v1710 = vadd.f32 %v1708, %v1709
    %v1711 = vrot.slane %v1710, 2
    %v1712 = vadd.f32 %v1710, %v1711
    %v1713 = vrot.slane %v1712, 1
    %v1714 = vadd.f32 %v1712, %v1713
    %v1715 = vsel %vm1665, %v1624, 0.0
    %v1716 = vrot.slane %v1715, 4
    %v1717 = vadd.f32 %v1715, %v1716
    %v1718 = vrot.slane %v1717, 2
    %v1719 = vadd.f32 %v1717, %v1718
    %v1720 = vrot.slane %v1719, 1
    %v1721 = vadd.f32 %v1719, %v1720
    %v1722 = vsel %vm1665, %v1627, 0.0
    %v1723 = vrot.slane %v1722, 4
    %v1724 = vadd.f32 %v1722, %v1723
    %v1725 = vrot.slane %v1724, 2
    %v1726 = vadd.f32 %v1724, %v1725
    %v1727 = vrot.slane %v1726, 1
    %v1728 = vadd.f32 %v1726, %v1727
    %v1729 = vsel %vm1665, %v1630, 0.0
    %v1730 = vrot.slane %v1729, 4
    %v1731 = vadd.f32 %v1729, %v1730
    %v1732 = vrot.slane %v1731, 2
    %v1733 = vadd.f32 %v1731, %v1732
    %v1734 = vrot.slane %v1733, 1
    %v1735 = vadd.f32 %v1733, %v1734
    %v1736 = vsel %vm1665, %v1633, 0.0
    %v1737 = vrot.slane %v1736, 4
    %v1738 = vadd.f32 %v1736, %v1737
    %v1739 = vrot.slane %v1738, 2
    %v1740 = vadd.f32 %v1738, %v1739
    %v1741 = vrot.slane %v1740, 1
    %v1742 = vadd.f32 %v1740, %v1741
    %v1743 = vsel %vm1665, %v1636, 0.0
    %v1744 = vrot.slane %v1743, 4
    %v1745 = vadd.f32 %v1743, %v1744
    %v1746 = vrot.slane %v1745, 2
    %v1747 = vadd.f32 %v1745, %v1746
    %v1748 = vrot.slane %v1747, 1
    %v1749 = vadd.f32 %v1747, %v1748
    %v1750 = vsel %vm1665, %v1639, 0.0
    %v1751 = vrot.slane %v1750, 4
    %v1752 = vadd.f32 %v1750, %v1751
    %v1753 = vrot.slane %v1752, 2
    %v1754 = vadd.f32 %v1752, %v1753
    %v1755 = vrot.slane %v1754, 1
    %v1756 = vadd.f32 %v1754, %v1755
    %v1757 = vsel %vm1665, %v1642, 0.0
    %v1758 = vrot.slane %v1757, 4
    %v1759 = vadd.f32 %v1757, %v1758
    %v1760 = vrot.slane %v1759, 2
    %v1761 = vadd.f32 %v1759, %v1760
    %v1762 = vrot.slane %v1761, 1
    %v1763 = vadd.f32 %v1761, %v1762
    %v1764 = vsel %vm1665, %v1645, 0.0
    %v1765 = vrot.slane %v1764, 4
    %v1766 = vadd.f32 %v1764, %v1765
    %v1767 = vrot.slane %v1766, 2
    %v1768 = vadd.f32 %v1766, %v1767
    %v1769 = vrot.slane %v1768, 1
    %v1770 = vadd.f32 %v1768, %v1769
    %v1771 = vsel %vm1665, %v1648, 0.0
    %v1772 = vrot.slane %v1771, 4
    %v1773 = vadd.f32 %v1771, %v1772
    %v1774 = vrot.slane %v1773, 2
    %v1775 = vadd.f32 %v1773, %v1774
    %v1776 = vrot.slane %v1775, 1
    %v1777 = vadd.f32 %v1775, %v1776
    %vm1778 = vcmask 1045504
    %v1779 = vsel %vm1778, %v1265, %v1437
    %v1780 = vsel %vm1778, %v1266, %v1438
    %v1781 = vsel %vm1778, %v1267, %v1439
    %v1782 = vsel %vm1778, %v1268, %v1440
    %v1783 = vsel %vm1778, %v1269, %v1441
    %v1784 = vsel %vm1778, %v1270, %v1442
    %v1785 = vsel %vm1778, %v1271, %v1443
    %v1786 = vsel %vm1778, %v1272, %v1444
    %v1787 = vsel %vm1778, %v1273, %v1445
    %v1788 = vsel %vm1778, %v1274, %v1446
    %v1789 = vsel %vm1778, %v1275, %v1447
    %v1790 = vsel %vm1778, %v1276, %v1448
    %v1791 = vsel %vm1778, %v1277, %v1449
    %v1792 = vsel %vm1778, %v1278, %v1450
    %v1793 = vsel %vm1778, %v1279, %v1451
    %v1794 = vsel %vm1778, %v1280, %v1452
    %vm1795 = vcmask 1040384
    %v1796 = vsel %vm1795, %v1453, %v1672
    %v1797 = vsel %vm1795, %v1454, %v1679
    %v1798 = vsel %vm1795, %v1455, %v1686
    %v1799 = vsel %vm1795, %v1456, %v1693
    %v1800 = vsel %vm1795, %v1457, %v1700
    %v1801 = vsel %vm1795, %v1458, %v1707
    %v1802 = vsel %vm1795, %v1459, %v1714
    %v1803 = vsel %vm1795, %v1460, %v1721
    %v1804 = vsel %vm1795, %v1461, %v1728
    %v1805 = vsel %vm1795, %v1462, %v1735
    %v1806 = vsel %vm1795, %v1463, %v1742
    %v1807 = vsel %vm1795, %v1464, %v1749
    %v1808 = vsel %vm1795, %v1465, %v1756
    %v1809 = vsel %vm1795, %v1466, %v1763
    %v1810 = vsel %vm1795, %v1467, %v1770
    %v1811 = vsel %vm1795, %v1468, %v1777
    %v1812 = vld [vmem:[#allocation7] sm:$0xff]
    %v1813 = vld [vmem:[#allocation7 + $0x8] sm:$0xff]
    %v1814 = vld [vmem:[#allocation7 + $0x10] sm:$0xff]
    %v1815 = vld [vmem:[#allocation7 + $0x18] sm:$0x3]
    %v1816 = vld [vmem:[%s3] sm:$0xff]
    %v1817 = vld [vmem:[%s3 + $0x8] sm:$0xff]
    %v1818 = vld [vmem:[%s3 + $0x10] sm:$0xff]
    %v1819 = vld [vmem:[%s3 + $0x18] sm:$0x3]
    %1821 = vset.pattern.permute.xlu0 0
    %1822 = vperm.xlu0 %1821, %v1816
    %v1823 = vpop.permute.xlu0 %1822
    %1826 = vset.pattern.permute.xlu0 0
    %1827 = vperm.xlu0 %1826, %v1817
    %v1828 = vpop.permute.xlu0 %1827
    %1831 = vset.pattern.permute.xlu0 0
    %1832 = vperm.xlu0 %1831, %v1818
    %v1833 = vpop.permute.xlu0 %1832
    %1836 = vset.pattern.permute.xlu0 0
    %1837 = vperm.xlu0 %1836, %v1819
    %v1838 = vpop.permute.xlu0 %1837
    %vm1840 = vcmask 343040
    %v1842 = vsel %vm1840, %v1812, 0
    %v1845 = vsel %vm1840, %v1813, 0
    %v1848 = vsel %vm1840, %v1814, 0
    %v1851 = vsel %vm1840, %v1815, 0
    %v1854 = vsel %vm1600, %v1796, 0
    %v1857 = vsel %vm1600, %v1797, 0
    %v1860 = vsel %vm1600, %v1798, 0
    %v1863 = vsel %vm1600, %v1799, 0
    %v1866 = vsel %vm1600, %v1800, 0
    %v1869 = vsel %vm1600, %v1801, 0
    %v1872 = vsel %vm1600, %v1802, 0
    %v1875 = vsel %vm1600, %v1803, 0
    %v1878 = vsel %vm1600, %v1804, 0
    %v1881 = vsel %vm1600, %v1805, 0
    %v1884 = vsel %vm1600, %v1806, 0
    %v1887 = vsel %vm1600, %v1807, 0
    %v1890 = vsel %vm1600, %v1808, 0
    %v1893 = vsel %vm1600, %v1809, 0
    %v1896 = vsel %vm1600, %v1810, 0
    %v1899 = vsel %vm1600, %v1811, 0
    %1901 = vmatpush.msra.mxu0 0.0
    %1902 = vmatpush.msra.mxu0 0.0
    %1903 = vmatpush.msra.mxu0 0.0
    %1904 = vmatpush.msra.mxu0 0.0
    %1905 = vmatpush.msra.mxu0 0.0
    %1906 = vmatpush.msra.mxu0 0.0
    %1907 = vmatpush.msra.mxu0 0.0
    %1908 = vmatpush.msra.mxu0 0.0
    %1909 = vmatpush.msra.mxu0 0.0
    %1910 = vmatpush.msra.mxu0 0.0
    %1911 = vmatpush.msra.mxu0 %v1854
    %1912 = vmatpush.msra.mxu0 %v1779
    %1913 = vmatpush.msra.mxu0 %v1249
    %1914 = vmatpush.msra.mxu0 %v1233
    %1915 = vmatpush.msra.mxu0 %v1217
    %1916 = vmatpush.msra.mxu0 %v1201
    %1917 = vmatmul.f32.gmra.mxu0 %v1842
    %v1918 = vpop.f32.mrf.mxu0
    %v1919 = vadd.f32 %v1823, %v1918
    %1920 = vmatmul.f32.gmra.mxu0 %v1845
    %v1921 = vpop.f32.mrf.mxu0
    %v1922 = vadd.f32 %v1828, %v1921
    %1923 = vmatmul.f32.gmra.mxu0 %v1848
    %v1924 = vpop.f32.mrf.mxu0
    %v1925 = vadd.f32 %v1833, %v1924
    %1926 = vmatmul.f32.gmra.mxu0 %v1851
    %v1927 = vpop.f32.mrf.mxu0
    %v1928 = vadd.f32 %v1838, %v1927
    %1929 = vdwg.mxu0
    %1930 = vmatpush.msra.mxu0 0.0
    %1931 = vmatpush.msra.mxu0 0.0
    %1932 = vmatpush.msra.mxu0 0.0
    %1933 = vmatpush.msra.mxu0 0.0
    %1934 = vmatpush.msra.mxu0 0.0
    %1935 = vmatpush.msra.mxu0 0.0
    %1936 = vmatpush.msra.mxu0 0.0
    %1937 = vmatpush.msra.mxu0 0.0
    %1938 = vmatpush.msra.mxu0 0.0
    %1939 = vmatpush.msra.mxu0 0.0
    %1940 = vmatpush.msra.mxu0 %v1857
    %1941 = vmatpush.msra.mxu0 %v1780
    %1942 = vmatpush.msra.mxu0 %v1250
    %1943 = vmatpush.msra.mxu0 %v1234
    %1944 = vmatpush.msra.mxu0 %v1218
    %1945 = vmatpush.msra.mxu0 %v1202
    %1946 = vmatmul.f32.gmra.mxu0 %v1842
    %v1947 = vpop.f32.mrf.mxu0
    %v1948 = vadd.f32 %v1823, %v1947
    %1949 = vmatmul.f32.gmra.mxu0 %v1845
    %v1950 = vpop.f32.mrf.mxu0
    %v1951 = vadd.f32 %v1828, %v1950
    %1952 = vmatmul.f32.gmra.mxu0 %v1848
    %v1953 = vpop.f32.mrf.mxu0
    %v1954 = vadd.f32 %v1833, %v1953
    %1955 = vmatmul.f32.gmra.mxu0 %v1851
    %v1956 = vpop.f32.mrf.mxu0
    %v1957 = vadd.f32 %v1838, %v1956
    %1958 = vdwg.mxu0
    %1959 = vmatpush.msra.mxu0 0.0
    %1960 = vmatpush.msra.mxu0 0.0
    %1961 = vmatpush.msra.mxu0 0.0
    %1962 = vmatpush.msra.mxu0 0.0
    %1963 = vmatpush.msra.mxu0 0.0
    %1964 = vmatpush.msra.mxu0 0.0
    %1965 = vmatpush.msra.mxu0 0.0
    %1966 = vmatpush.msra.mxu0 0.0
    %1967 = vmatpush.msra.mxu0 0.0
    %1968 = vmatpush.msra.mxu0 0.0
    %1969 = vmatpush.msra.mxu0 %v1860
    %1970 = vmatpush.msra.mxu0 %v1781
    %1971 = vmatpush.msra.mxu0 %v1251
    %1972 = vmatpush.msra.mxu0 %v1235
    %1973 = vmatpush.msra.mxu0 %v1219
    %1974 = vmatpush.msra.mxu0 %v1203
    %1975 = vmatmul.f32.gmra.mxu0 %v1842
    %v1976 = vpop.f32.mrf.mxu0
    %v1977 = vadd.f32 %v1823, %v1976
    %1978 = vmatmul.f32.gmra.mxu0 %v1845
    %v1979 = vpop.f32.mrf.mxu0
    %v1980 = vadd.f32 %v1828, %v1979
    %1981 = vmatmul.f32.gmra.mxu0 %v1848
    %v1982 = vpop.f32.mrf.mxu0
    %v1983 = vadd.f32 %v1833, %v1982
    %1984 = vmatmul.f32.gmra.mxu0 %v1851
    %v1985 = vpop.f32.mrf.mxu0
    %v1986 = vadd.f32 %v1838, %v1985
    %1987 = vdwg.mxu0
    %1988 = vmatpush.msra.mxu0 0.0
    %1989 = vmatpush.msra.mxu0 0.0
    %1990 = vmatpush.msra.mxu0 0.0
    %1991 = vmatpush.msra.mxu0 0.0
    %1992 = vmatpush.msra.mxu0 0.0
    %1993 = vmatpush.msra.mxu0 0.0
    %1994 = vmatpush.msra.mxu0 0.0
    %1995 = vmatpush.msra.mxu0 0.0
    %1996 = vmatpush.msra.mxu0 0.0
    %1997 = vmatpush.msra.mxu0 0.0
    %1998 = vmatpush.msra.mxu0 %v1863
    %1999 = vmatpush.msra.mxu0 %v1782
    %2000 = vmatpush.msra.mxu0 %v1252
    %2001 = vmatpush.msra.mxu0 %v1236
    %2002 = vmatpush.msra.mxu0 %v1220
    %2003 = vmatpush.msra.mxu0 %v1204
    %2004 = vmatmul.f32.gmra.mxu0 %v1842
    %v2005 = vpop.f32.mrf.mxu0
    %v2006 = vadd.f32 %v1823, %v2005
    %2007 = vmatmul.f32.gmra.mxu0 %v1845
    %v2008 = vpop.f32.mrf.mxu0
    %v2009 = vadd.f32 %v1828, %v2008
    %2010 = vmatmul.f32.gmra.mxu0 %v1848
    %v2011 = vpop.f32.mrf.mxu0
    %v2012 = vadd.f32 %v1833, %v2011
    %2013 = vmatmul.f32.gmra.mxu0 %v1851
    %v2014 = vpop.f32.mrf.mxu0
    %v2015 = vadd.f32 %v1838, %v2014
    %2016 = vdwg.mxu0
    %2017 = vmatpush.msra.mxu0 0.0
    %2018 = vmatpush.msra.mxu0 0.0
    %2019 = vmatpush.msra.mxu0 0.0
    %2020 = vmatpush.msra.mxu0 0.0
    %2021 = vmatpush.msra.mxu0 0.0
    %2022 = vmatpush.msra.mxu0 0.0
    %2023 = vmatpush.msra.mxu0 0.0
    %2024 = vmatpush.msra.mxu0 0.0
    %2025 = vmatpush.msra.mxu0 0.0
    %2026 = vmatpush.msra.mxu0 0.0
    %2027 = vmatpush.msra.mxu0 %v1866
    %2028 = vmatpush.msra.mxu0 %v1783
    %2029 = vmatpush.msra.mxu0 %v1253
    %2030 = vmatpush.msra.mxu0 %v1237
    %2031 = vmatpush.msra.mxu0 %v1221
    %2032 = vmatpush.msra.mxu0 %v1205
    %2033 = vmatmul.f32.gmra.mxu0 %v1842
    %v2034 = vpop.f32.mrf.mxu0
    %v2035 = vadd.f32 %v1823, %v2034
    %2036 = vmatmul.f32.gmra.mxu0 %v1845
    %v2037 = vpop.f32.mrf.mxu0
    %v2038 = vadd.f32 %v1828, %v2037
    %2039 = vmatmul.f32.gmra.mxu0 %v1848
    %v2040 = vpop.f32.mrf.mxu0
    %v2041 = vadd.f32 %v1833, %v2040
    %2042 = vmatmul.f32.gmra.mxu0 %v1851
    %v2043 = vpop.f32.mrf.mxu0
    %v2044 = vadd.f32 %v1838, %v2043
    %2045 = vdwg.mxu0
    %2046 = vmatpush.msra.mxu0 0.0
    %2047 = vmatpush.msra.mxu0 0.0
    %2048 = vmatpush.msra.mxu0 0.0
    %2049 = vmatpush.msra.mxu0 0.0
    %2050 = vmatpush.msra.mxu0 0.0
    %2051 = vmatpush.msra.mxu0 0.0
    %2052 = vmatpush.msra.mxu0 0.0
    %2053 = vmatpush.msra.mxu0 0.0
    %2054 = vmatpush.msra.mxu0 0.0
    %2055 = vmatpush.msra.mxu0 0.0
    %2056 = vmatpush.msra.mxu0 %v1869
    %2057 = vmatpush.msra.mxu0 %v1784
    %2058 = vmatpush.msra.mxu0 %v1254
    %2059 = vmatpush.msra.mxu0 %v1238
    %2060 = vmatpush.msra.mxu0 %v1222
    %2061 = vmatpush.msra.mxu0 %v1206
    %2062 = vmatmul.f32.gmra.mxu0 %v1842
    %v2063 = vpop.f32.mrf.mxu0
    %v2064 = vadd.f32 %v1823, %v2063
    %2065 = vmatmul.f32.gmra.mxu0 %v1845
    %v2066 = vpop.f32.mrf.mxu0
    %v2067 = vadd.f32 %v1828, %v2066
    %2068 = vmatmul.f32.gmra.mxu0 %v1848
    %v2069 = vpop.f32.mrf.mxu0
    %v2070 = vadd.f32 %v1833, %v2069
    %2071 = vmatmul.f32.gmra.mxu0 %v1851
    %v2072 = vpop.f32.mrf.mxu0
    %v2073 = vadd.f32 %v1838, %v2072
    %2074 = vdwg.mxu0
    %2075 = vmatpush.msra.mxu0 0.0
    %2076 = vmatpush.msra.mxu0 0.0
    %2077 = vmatpush.msra.mxu0 0.0
    %2078 = vmatpush.msra.mxu0 0.0
    %2079 = vmatpush.msra.mxu0 0.0
    %2080 = vmatpush.msra.mxu0 0.0
    %2081 = vmatpush.msra.mxu0 0.0
    %2082 = vmatpush.msra.mxu0 0.0
    %2083 = vmatpush.msra.mxu0 0.0
    %2084 = vmatpush.msra.mxu0 0.0
    %2085 = vmatpush.msra.mxu0 %v1872
    %2086 = vmatpush.msra.mxu0 %v1785
    %2087 = vmatpush.msra.mxu0 %v1255
    %2088 = vmatpush.msra.mxu0 %v1239
    %2089 = vmatpush.msra.mxu0 %v1223
    %2090 = vmatpush.msra.mxu0 %v1207
    %2091 = vmatmul.f32.gmra.mxu0 %v1842
    %v2092 = vpop.f32.mrf.mxu0
    %v2093 = vadd.f32 %v1823, %v2092
    %2094 = vmatmul.f32.gmra.mxu0 %v1845
    %v2095 = vpop.f32.mrf.mxu0
    %v2096 = vadd.f32 %v1828, %v2095
    %2097 = vmatmul.f32.gmra.mxu0 %v1848
    %v2098 = vpop.f32.mrf.mxu0
    %v2099 = vadd.f32 %v1833, %v2098
    %2100 = vmatmul.f32.gmra.mxu0 %v1851
    %v2101 = vpop.f32.mrf.mxu0
    %v2102 = vadd.f32 %v1838, %v2101
    %2103 = vdwg.mxu0
    %2104 = vmatpush.msra.mxu0 0.0
    %2105 = vmatpush.msra.mxu0 0.0
    %2106 = vmatpush.msra.mxu0 0.0
    %2107 = vmatpush.msra.mxu0 0.0
    %2108 = vmatpush.msra.mxu0 0.0
    %2109 = vmatpush.msra.mxu0 0.0
    %2110 = vmatpush.msra.mxu0 0.0
    %2111 = vmatpush.msra.mxu0 0.0
    %2112 = vmatpush.msra.mxu0 0.0
    %2113 = vmatpush.msra.mxu0 0.0
    %2114 = vmatpush.msra.mxu0 %v1875
    %2115 = vmatpush.msra.mxu0 %v1786
    %2116 = vmatpush.msra.mxu0 %v1256
    %2117 = vmatpush.msra.mxu0 %v1240
    %2118 = vmatpush.msra.mxu0 %v1224
    %2119 = vmatpush.msra.mxu0 %v1208
    %2120 = vmatmul.f32.gmra.mxu0 %v1842
    %v2121 = vpop.f32.mrf.mxu0
    %v2122 = vadd.f32 %v1823, %v2121
    %2123 = vmatmul.f32.gmra.mxu0 %v1845
    %v2124 = vpop.f32.mrf.mxu0
    %v2125 = vadd.f32 %v1828, %v2124
    %2126 = vmatmul.f32.gmra.mxu0 %v1848
    %v2127 = vpop.f32.mrf.mxu0
    %v2128 = vadd.f32 %v1833, %v2127
    %2129 = vmatmul.f32.gmra.mxu0 %v1851
    %v2130 = vpop.f32.mrf.mxu0
    %v2131 = vadd.f32 %v1838, %v2130
    %2132 = vdwg.mxu0
    %2133 = vmatpush.msra.mxu0 0.0
    %2134 = vmatpush.msra.mxu0 0.0
    %2135 = vmatpush.msra.mxu0 0.0
    %2136 = vmatpush.msra.mxu0 0.0
    %2137 = vmatpush.msra.mxu0 0.0
    %2138 = vmatpush.msra.mxu0 0.0
    %2139 = vmatpush.msra.mxu0 0.0
    %2140 = vmatpush.msra.mxu0 0.0
    %2141 = vmatpush.msra.mxu0 0.0
    %2142 = vmatpush.msra.mxu0 0.0
    %2143 = vmatpush.msra.mxu0 %v1878
    %2144 = vmatpush.msra.mxu0 %v1787
    %2145 = vmatpush.msra.mxu0 %v1257
    %2146 = vmatpush.msra.mxu0 %v1241
    %2147 = vmatpush.msra.mxu0 %v1225
    %2148 = vmatpush.msra.mxu0 %v1209
    %2149 = vmatmul.f32.gmra.mxu0 %v1842
    %v2150 = vpop.f32.mrf.mxu0
    %v2151 = vadd.f32 %v1823, %v2150
    %2152 = vmatmul.f32.gmra.mxu0 %v1845
    %v2153 = vpop.f32.mrf.mxu0
    %v2154 = vadd.f32 %v1828, %v2153
    %2155 = vmatmul.f32.gmra.mxu0 %v1848
    %v2156 = vpop.f32.mrf.mxu0
    %v2157 = vadd.f32 %v1833, %v2156
    %2158 = vmatmul.f32.gmra.mxu0 %v1851
    %v2159 = vpop.f32.mrf.mxu0
    %v2160 = vadd.f32 %v1838, %v2159
    %2161 = vdwg.mxu0
    %2162 = vmatpush.msra.mxu0 0.0
    %2163 = vmatpush.msra.mxu0 0.0
    %2164 = vmatpush.msra.mxu0 0.0
    %2165 = vmatpush.msra.mxu0 0.0
    %2166 = vmatpush.msra.mxu0 0.0
    %2167 = vmatpush.msra.mxu0 0.0
    %2168 = vmatpush.msra.mxu0 0.0
    %2169 = vmatpush.msra.mxu0 0.0
    %2170 = vmatpush.msra.mxu0 0.0
    %2171 = vmatpush.msra.mxu0 0.0
    %2172 = vmatpush.msra.mxu0 %v1881
    %2173 = vmatpush.msra.mxu0 %v1788
    %2174 = vmatpush.msra.mxu0 %v1258
    %2175 = vmatpush.msra.mxu0 %v1242
    %2176 = vmatpush.msra.mxu0 %v1226
    %2177 = vmatpush.msra.mxu0 %v1210
    %2178 = vmatmul.f32.gmra.mxu0 %v1842
    %v2179 = vpop.f32.mrf.mxu0
    %v2180 = vadd.f32 %v1823, %v2179
    %2181 = vmatmul.f32.gmra.mxu0 %v1845
    %v2182 = vpop.f32.mrf.mxu0
    %v2183 = vadd.f32 %v1828, %v2182
    %2184 = vmatmul.f32.gmra.mxu0 %v1848
    %v2185 = vpop.f32.mrf.mxu0
    %v2186 = vadd.f32 %v1833, %v2185
    %2187 = vmatmul.f32.gmra.mxu0 %v1851
    %v2188 = vpop.f32.mrf.mxu0
    %v2189 = vadd.f32 %v1838, %v2188
    %2190 = vdwg.mxu0
    %2191 = vmatpush.msra.mxu0 0.0
    %2192 = vmatpush.msra.mxu0 0.0
    %2193 = vmatpush.msra.mxu0 0.0
    %2194 = vmatpush.msra.mxu0 0.0
    %2195 = vmatpush.msra.mxu0 0.0
    %2196 = vmatpush.msra.mxu0 0.0
    %2197 = vmatpush.msra.mxu0 0.0
    %2198 = vmatpush.msra.mxu0 0.0
    %2199 = vmatpush.msra.mxu0 0.0
    %2200 = vmatpush.msra.mxu0 0.0
    %2201 = vmatpush.msra.mxu0 %v1884
    %2202 = vmatpush.msra.mxu0 %v1789
    %2203 = vmatpush.msra.mxu0 %v1259
    %2204 = vmatpush.msra.mxu0 %v1243
    %2205 = vmatpush.msra.mxu0 %v1227
    %2206 = vmatpush.msra.mxu0 %v1211
    %2207 = vmatmul.f32.gmra.mxu0 %v1842
    %v2208 = vpop.f32.mrf.mxu0
    %v2209 = vadd.f32 %v1823, %v2208
    %2210 = vmatmul.f32.gmra.mxu0 %v1845
    %v2211 = vpop.f32.mrf.mxu0
    %v2212 = vadd.f32 %v1828, %v2211
    %2213 = vmatmul.f32.gmra.mxu0 %v1848
    %v2214 = vpop.f32.mrf.mxu0
    %v2215 = vadd.f32 %v1833, %v2214
    %2216 = vmatmul.f32.gmra.mxu0 %v1851
    %v2217 = vpop.f32.mrf.mxu0
    %v2218 = vadd.f32 %v1838, %v2217
    %2219 = vdwg.mxu0
    %2220 = vmatpush.msra.mxu0 0.0
    %2221 = vmatpush.msra.mxu0 0.0
    %2222 = vmatpush.msra.mxu0 0.0
    %2223 = vmatpush.msra.mxu0 0.0
    %2224 = vmatpush.msra.mxu0 0.0
    %2225 = vmatpush.msra.mxu0 0.0
    %2226 = vmatpush.msra.mxu0 0.0
    %2227 = vmatpush.msra.mxu0 0.0
    %2228 = vmatpush.msra.mxu0 0.0
    %2229 = vmatpush.msra.mxu0 0.0
    %2230 = vmatpush.msra.mxu0 %v1887
    %2231 = vmatpush.msra.mxu0 %v1790
    %2232 = vmatpush.msra.mxu0 %v1260
    %2233 = vmatpush.msra.mxu0 %v1244
    %2234 = vmatpush.msra.mxu0 %v1228
    %2235 = vmatpush.msra.mxu0 %v1212
    %2236 = vmatmul.f32.gmra.mxu0 %v1842
    %v2237 = vpop.f32.mrf.mxu0
    %v2238 = vadd.f32 %v1823, %v2237
    %2239 = vmatmul.f32.gmra.mxu0 %v1845
    %v2240 = vpop.f32.mrf.mxu0
    %v2241 = vadd.f32 %v1828, %v2240
    %2242 = vmatmul.f32.gmra.mxu0 %v1848
    %v2243 = vpop.f32.mrf.mxu0
    %v2244 = vadd.f32 %v1833, %v2243
    %2245 = vmatmul.f32.gmra.mxu0 %v1851
    %v2246 = vpop.f32.mrf.mxu0
    %v2247 = vadd.f32 %v1838, %v2246
    %2248 = vdwg.mxu0
    %2249 = vmatpush.msra.mxu0 0.0
    %2250 = vmatpush.msra.mxu0 0.0
    %2251 = vmatpush.msra.mxu0 0.0
    %2252 = vmatpush.msra.mxu0 0.0
    %2253 = vmatpush.msra.mxu0 0.0
    %2254 = vmatpush.msra.mxu0 0.0
    %2255 = vmatpush.msra.mxu0 0.0
    %2256 = vmatpush.msra.mxu0 0.0
    %2257 = vmatpush.msra.mxu0 0.0
    %2258 = vmatpush.msra.mxu0 0.0
    %2259 = vmatpush.msra.mxu0 %v1890
    %2260 = vmatpush.msra.mxu0 %v1791
    %2261 = vmatpush.msra.mxu0 %v1261
    %2262 = vmatpush.msra.mxu0 %v1245
    %2263 = vmatpush.msra.mxu0 %v1229
    %2264 = vmatpush.msra.mxu0 %v1213
    %2265 = vmatmul.f32.gmra.mxu0 %v1842
    %v2266 = vpop.f32.mrf.mxu0
    %v2267 = vadd.f32 %v1823, %v2266
    %2268 = vmatmul.f32.gmra.mxu0 %v1845
    %v2269 = vpop.f32.mrf.mxu0
    %v2270 = vadd.f32 %v1828, %v2269
    %2271 = vmatmul.f32.gmra.mxu0 %v1848
    %v2272 = vpop.f32.mrf.mxu0
    %v2273 = vadd.f32 %v1833, %v2272
    %2274 = vmatmul.f32.gmra.mxu0 %v1851
    %v2275 = vpop.f32.mrf.mxu0
    %v2276 = vadd.f32 %v1838, %v2275
    %2277 = vdwg.mxu0
    %2278 = vmatpush.msra.mxu0 0.0
    %2279 = vmatpush.msra.mxu0 0.0
    %2280 = vmatpush.msra.mxu0 0.0
    %2281 = vmatpush.msra.mxu0 0.0
    %2282 = vmatpush.msra.mxu0 0.0
    %2283 = vmatpush.msra.mxu0 0.0
    %2284 = vmatpush.msra.mxu0 0.0
    %2285 = vmatpush.msra.mxu0 0.0
    %2286 = vmatpush.msra.mxu0 0.0
    %2287 = vmatpush.msra.mxu0 0.0
    %2288 = vmatpush.msra.mxu0 %v1893
    %2289 = vmatpush.msra.mxu0 %v1792
    %2290 = vmatpush.msra.mxu0 %v1262
    %2291 = vmatpush.msra.mxu0 %v1246
    %2292 = vmatpush.msra.mxu0 %v1230
    %2293 = vmatpush.msra.mxu0 %v1214
    %2294 = vmatmul.f32.gmra.mxu0 %v1842
    %v2295 = vpop.f32.mrf.mxu0
    %v2296 = vadd.f32 %v1823, %v2295
    %2297 = vmatmul.f32.gmra.mxu0 %v1845
    %v2298 = vpop.f32.mrf.mxu0
    %v2299 = vadd.f32 %v1828, %v2298
    %2300 = vmatmul.f32.gmra.mxu0 %v1848
    %v2301 = vpop.f32.mrf.mxu0
    %v2302 = vadd.f32 %v1833, %v2301
    %2303 = vmatmul.f32.gmra.mxu0 %v1851
    %v2304 = vpop.f32.mrf.mxu0
    %v2305 = vadd.f32 %v1838, %v2304
    %2306 = vdwg.mxu0
    %2307 = vmatpush.msra.mxu0 0.0
    %2308 = vmatpush.msra.mxu0 0.0
    %2309 = vmatpush.msra.mxu0 0.0
    %2310 = vmatpush.msra.mxu0 0.0
    %2311 = vmatpush.msra.mxu0 0.0
    %2312 = vmatpush.msra.mxu0 0.0
    %2313 = vmatpush.msra.mxu0 0.0
    %2314 = vmatpush.msra.mxu0 0.0
    %2315 = vmatpush.msra.mxu0 0.0
    %2316 = vmatpush.msra.mxu0 0.0
    %2317 = vmatpush.msra.mxu0 %v1896
    %2318 = vmatpush.msra.mxu0 %v1793
    %2319 = vmatpush.msra.mxu0 %v1263
    %2320 = vmatpush.msra.mxu0 %v1247
    %2321 = vmatpush.msra.mxu0 %v1231
    %2322 = vmatpush.msra.mxu0 %v1215
    %2323 = vmatmul.f32.gmra.mxu0 %v1842
    %v2324 = vpop.f32.mrf.mxu0
    %v2325 = vadd.f32 %v1823, %v2324
    %2326 = vmatmul.f32.gmra.mxu0 %v1845
    %v2327 = vpop.f32.mrf.mxu0
    %v2328 = vadd.f32 %v1828, %v2327
    %2329 = vmatmul.f32.gmra.mxu0 %v1848
    %v2330 = vpop.f32.mrf.mxu0
    %v2331 = vadd.f32 %v1833, %v2330
    %2332 = vmatmul.f32.gmra.mxu0 %v1851
    %v2333 = vpop.f32.mrf.mxu0
    %v2334 = vadd.f32 %v1838, %v2333
    %2335 = vdwg.mxu0
    %2336 = vmatpush.msra.mxu0 0.0
    %2337 = vmatpush.msra.mxu0 0.0
    %2338 = vmatpush.msra.mxu0 0.0
    %2339 = vmatpush.msra.mxu0 0.0
    %2340 = vmatpush.msra.mxu0 0.0
    %2341 = vmatpush.msra.mxu0 0.0
    %2342 = vmatpush.msra.mxu0 0.0
    %2343 = vmatpush.msra.mxu0 0.0
    %2344 = vmatpush.msra.mxu0 0.0
    %2345 = vmatpush.msra.mxu0 0.0
    %2346 = vmatpush.msra.mxu0 %v1899
    %2347 = vmatpush.msra.mxu0 %v1794
    %2348 = vmatpush.msra.mxu0 %v1264
    %2349 = vmatpush.msra.mxu0 %v1248
    %2350 = vmatpush.msra.mxu0 %v1232
    %2351 = vmatpush.msra.mxu0 %v1216
    %2352 = vmatmul.f32.gmra.mxu0 %v1842
    %v2353 = vpop.f32.mrf.mxu0
    %v2354 = vadd.f32 %v1823, %v2353
    %2355 = vmatmul.f32.gmra.mxu0 %v1845
    %v2356 = vpop.f32.mrf.mxu0
    %v2357 = vadd.f32 %v1828, %v2356
    %2358 = vmatmul.f32.gmra.mxu0 %v1848
    %v2359 = vpop.f32.mrf.mxu0
    %v2360 = vadd.f32 %v1833, %v2359
    %2361 = vmatmul.f32.gmra.mxu0 %v1851
    %v2362 = vpop.f32.mrf.mxu0
    %v2363 = vadd.f32 %v1838, %v2362
    %2364 = vdwg.mxu0
    %2365 = vst [vmem:[#allocation8] sm:$0xff] %v1919
    %2366 = vst [vmem:[#allocation8 + $0x8] sm:$0xff] %v1948
    %2367 = vst [vmem:[#allocation8 + $0x10] sm:$0xff] %v1977
    %2368 = vst [vmem:[#allocation8 + $0x18] sm:$0xff] %v2006
    %2369 = vst [vmem:[#allocation8 + $0x20] sm:$0xff] %v2035
    %2370 = vst [vmem:[#allocation8 + $0x28] sm:$0xff] %v2064
    %2371 = vst [vmem:[#allocation8 + $0x30] sm:$0xff] %v2093
    %2372 = vst [vmem:[#allocation8 + $0x38] sm:$0xff] %v2122
    %2373 = vst [vmem:[#allocation8 + $0x40] sm:$0xff] %v2151
    %2374 = vst [vmem:[#allocation8 + $0x48] sm:$0xff] %v2180
    %2375 = vst [vmem:[#allocation8 + $0x50] sm:$0xff] %v2209
    %2376 = vst [vmem:[#allocation8 + $0x58] sm:$0xff] %v2238
    %2377 = vst [vmem:[#allocation8 + $0x60] sm:$0xff] %v2267
    %2378 = vst [vmem:[#allocation8 + $0x68] sm:$0xff] %v2296
    %2379 = vst [vmem:[#allocation8 + $0x70] sm:$0xff] %v2325
    %2380 = vst [vmem:[#allocation8 + $0x78] sm:$0xff] %v2354
    %2381 = vst [vmem:[#allocation8 + $0x80] sm:$0xff] %v1922
    %2382 = vst [vmem:[#allocation8 + $0x88] sm:$0xff] %v1951
    %2383 = vst [vmem:[#allocation8 + $0x90] sm:$0xff] %v1980
    %2384 = vst [vmem:[#allocation8 + $0x98] sm:$0xff] %v2009
    %2385 = vst [vmem:[#allocation8 + $0xa0] sm:$0xff] %v2038
    %2386 = vst [vmem:[#allocation8 + $0xa8] sm:$0xff] %v2067
    %2387 = vst [vmem:[#allocation8 + $0xb0] sm:$0xff] %v2096
    %2388 = vst [vmem:[#allocation8 + $0xb8] sm:$0xff] %v2125
    %2389 = vst [vmem:[#allocation8 + $0xc0] sm:$0xff] %v2154
    %2390 = vst [vmem:[#allocation8 + $0xc8] sm:$0xff] %v2183
    %2391 = vst [vmem:[#allocation8 + $0xd0] sm:$0xff] %v2212
    %2392 = vst [vmem:[#allocation8 + $0xd8] sm:$0xff] %v2241
    %2393 = vst [vmem:[#allocation8 + $0xe0] sm:$0xff] %v2270
    %2394 = vst [vmem:[#allocation8 + $0xe8] sm:$0xff] %v2299
    %2395 = vst [vmem:[#allocation8 + $0xf0] sm:$0xff] %v2328
    %2396 = vst [vmem:[#allocation8 + $0xf8] sm:$0xff] %v2357
    %2397 = vst [vmem:[#allocation8 + $0x100] sm:$0xff] %v1925
    %2398 = vst [vmem:[#allocation8 + $0x108] sm:$0xff] %v1954
    %2399 = vst [vmem:[#allocation8 + $0x110] sm:$0xff] %v1983
    %2400 = vst [vmem:[#allocation8 + $0x118] sm:$0xff] %v2012
    %2401 = vst [vmem:[#allocation8 + $0x120] sm:$0xff] %v2041
    %2402 = vst [vmem:[#allocation8 + $0x128] sm:$0xff] %v2070
    %2403 = vst [vmem:[#allocation8 + $0x130] sm:$0xff] %v2099
    %2404 = vst [vmem:[#allocation8 + $0x138] sm:$0xff] %v2128
    %2405 = vst [vmem:[#allocation8 + $0x140] sm:$0xff] %v2157
    %2406 = vst [vmem:[#allocation8 + $0x148] sm:$0xff] %v2186
    %2407 = vst [vmem:[#allocation8 + $0x150] sm:$0xff] %v2215
    %2408 = vst [vmem:[#allocation8 + $0x158] sm:$0xff] %v2244
    %2409 = vst [vmem:[#allocation8 + $0x160] sm:$0xff] %v2273
    %2410 = vst [vmem:[#allocation8 + $0x168] sm:$0xff] %v2302
    %2411 = vst [vmem:[#allocation8 + $0x170] sm:$0xff] %v2331
    %2412 = vst [vmem:[#allocation8 + $0x178] sm:$0xff] %v2360
    %2413 = vst [vmem:[#allocation8 + $0x180] sm:$0x3] %v1928
    %2414 = vst [vmem:[#allocation8 + $0x188] sm:$0x3] %v1957
    %2415 = vst [vmem:[#allocation8 + $0x190] sm:$0x3] %v1986
    %2416 = vst [vmem:[#allocation8 + $0x198] sm:$0x3] %v2015
    %2417 = vst [vmem:[#allocation8 + $0x1a0] sm:$0x3] %v2044
    %2418 = vst [vmem:[#allocation8 + $0x1a8] sm:$0x3] %v2073
    %2419 = vst [vmem:[#allocation8 + $0x1b0] sm:$0x3] %v2102
    %2420 = vst [vmem:[#allocation8 + $0x1b8] sm:$0x3] %v2131
    %2421 = vst [vmem:[#allocation8 + $0x1c0] sm:$0x3] %v2160
    %2422 = vst [vmem:[#allocation8 + $0x1c8] sm:$0x3] %v2189
    %2423 = vst [vmem:[#allocation8 + $0x1d0] sm:$0x3] %v2218
    %2424 = vst [vmem:[#allocation8 + $0x1d8] sm:$0x3] %v2247
    %2425 = vst [vmem:[#allocation8 + $0x1e0] sm:$0x3] %v2276
    %2426 = vst [vmem:[#allocation8 + $0x1e8] sm:$0x3] %v2305
    %2427 = vst [vmem:[#allocation8 + $0x1f0] sm:$0x3] %v2334
    %2428 = vst [vmem:[#allocation8 + $0x1f8] sm:$0x3] %v2363
    // Predicated region
    $region30: #{tpu_custom_call.1} parent=1 // pred_check
      _
    $region31: #{tpu_custom_call.1} parent=1 // pred_check_branch
      %2430 = sbr.rel (0) target = $region33
    $region32: #{tpu_custom_call.1} parent=1 // pred_region
      %2432 = vsyncadd [#allocation4], 0
      %s2433 = sshll.u32 [#allocation8], 4
      %s2434 = int_to_ptr.vmem [resolvable:$true] %s2433
      %s2435 = sshll.u32 %s4, 4
      %s2436 = int_to_ptr.hbm [resolvable:$true] %s2435
      %2441 = dma.vmem_to_hbm [thread:$0]  %s2434, 8192, %s2436, [#allocation4], 2048, 2048, 128
    $region33: #{tpu_custom_call.1} parent=1 // pred_fallthru
      _
    // Predicated region
    $region34: #{tpu_custom_call.1} parent=1 // pred_check
      _
    $region35: #{tpu_custom_call.1} parent=1 // pred_check_branch
      %2443 = sbr.rel (0) target = $region37
    $region36: #{tpu_custom_call.1} parent=1 // pred_region
      %2445 = dma.done [#allocation4], 8192
    $region37: #{tpu_custom_call.1} parent=1 // pred_fallthru
      _
    %2446 = vsyncpa [#allocation3], 1
    %2447 = vsyncpa [#allocation6], 1
    %2448 = vsyncpa [#allocation4], 1

</llo_original>
